<compile_context>
chip_gen: v5e
topology: v5e:2x2
jax: 0.10.0
libtpu: 0.0.40
codegen_flags: <defaults>
</compile_context>

<pallas_src>
import functools
import math

import jax
import jax.numpy as jnp
import numpy as np
from jax.experimental import pallas as pl
from jax.experimental.pallas import tpu as pltpu

BF16 = jnp.bfloat16
F32 = jnp.float32

# ----------------------------- synthetic hparams -----------------------------
HP = dict(
    data_channels=3,
    input_conv_filters=16,
    input_kernel_size=3,
    up_strides=(2, 2),
    up_n_blocks_per_res=(1, 1),
    up_n_blocks=(2, 2),          # only used for init scaling of the last conv
    up_n_layers=(1, 1),
    up_filters=(16, 32),
    up_mid_filters_ratio=(0.5, 0.5),
    up_kernel_size=(3, 3),
    up_skip_filters=(8, 8),
)


# --------------------------- in-kernel conv helper ----------------------------
def _conv_same_accum(pad_ref, a3, w_ref, w_base, bias, *, H, W, KH, KW, c_in, c_out):
    """'same' KHxKW conv of a3 (H, W, c_in) f32 against stacked weights
    w_ref[w_base + kh*KW + kw] (c_in, c_out) bf16.  Zero padding goes through the
    VMEM scratch `pad_ref` (H+KH-1, W+KW-1, c_in) f32.  Returns (H*W, c_out) f32."""
    Hp, Wp = H + KH - 1, W + KW - 1
    ph, pw = (KH - 1) // 2, (KW - 1) // 2
    pad_ref[...] = jnp.zeros((Hp, Wp, c_in), F32)
    pad_ref[ph:ph + H, pw:pw + W, :] = a3
    acc = jnp.zeros((H * W, c_out), F32) + bias                       # bias (1, c_out)
    for kh in range(KH):
        for kw in range(KW):
            patch = pad_ref[kh:kh + H, kw:kw + W, :]                  # (H, W, c_in)
            acc = acc + jnp.dot(
                patch.reshape(H * W, c_in).astype(BF16),
                w_ref[w_base + kh * KW + kw],
                preferred_element_type=F32)
    return acc


# ------------------------------ input conv kernel -----------------------------
def _make_input_conv_kernel(*, H, W, Cin, Cout, KH, KW):
    def kernel(x_ref, w_ref, b_ref, o_ref, pad_ref):
        x3 = x_ref[0].reshape(H, W, Cin)
        acc = _conv_same_accum(pad_ref, x3, w_ref, 0, b_ref[...],
                               H=H, W=W, KH=KH, KW=KW, c_in=Cin, c_out=Cout)
        o_ref[0] = acc.astype(o_ref.dtype)
    return kernel


def input_conv_pallas(x2, w, b, *, H, W):
    """x2: (N, H*W, Cin) f32;  w: (KH, KW, Cin, Cout);  b: (Cout,)."""
    N, HW, Cin = x2.shape
    KH, KW, _, Cout = w.shape
    Hp, Wp = H + KH - 1, W + KW - 1
    wf = w.reshape(KH * KW, Cin, Cout).astype(BF16)
    b2 = b.reshape(1, Cout).astype(F32)
    kernel = _make_input_conv_kernel(H=H, W=W, Cin=Cin, Cout=Cout, KH=KH, KW=KW)
    return pl.pallas_call(
        kernel,
        out_shape=jax.ShapeDtypeStruct((N, HW, Cout), F32),
        grid_spec=pltpu.PrefetchScalarGridSpec(
            num_scalar_prefetch=0,
            grid=(N,),
            in_specs=[
                pl.BlockSpec((1, HW, Cin), lambda n: (n, 0, 0)),
                pl.BlockSpec((KH * KW, Cin, Cout), lambda n: (0, 0, 0)),
                pl.BlockSpec((1, Cout), lambda n: (0, 0)),
            ],
            out_specs=pl.BlockSpec((1, HW, Cout), lambda n: (n, 0, 0)),
            scratch_shapes=[pltpu.VMEM((Hp, Wp, Cin), F32)],
        ),
        compiler_params=pltpu.CompilerParams(dimension_semantics=("parallel",)),
    )(x2, wf, b2)


# -------------------------- fused LevelBlockUp kernel -------------------------
def _make_level_block_kernel(*, H, W, Cin, bott, n_layers, KH, KW,
                             stride, use_skip, Cskip, Cpool):
    HW = H * W
    Ho, Wo = H // stride, W // stride
    HoWo = Ho * Wo

    def kernel(*refs):
        it = iter(refs)
        x_ref = next(it)
        wa_ref, ba_ref = next(it), next(it)
        wk_ref, bk_ref = next(it), next(it)
        wb_ref, bb_ref = next(it), next(it)
        if use_skip:
            ws_ref, bs_ref = next(it), next(it)
        if stride > 1:
            p_ref, wp_ref, bp_ref = next(it), next(it), next(it)
        xout_ref = next(it)
        skip_ref = next(it) if use_skip else None
        pad_ref = next(it)

        x = x_ref[0]                                                  # (HW, Cin) f32

        # ---- ResidualConvCell:  x + C1x1_b( silu( Ckxk( ... silu( C1x1_a( silu(x) )))))
        h = jnp.dot(jax.nn.silu(x).astype(BF16), wa_ref[...],
                    preferred_element_type=F32) + ba_ref[...]          # (HW, bott)
        for l in range(n_layers):
            a = jax.nn.silu(h)                                         # SiLU once per layer
            h = _conv_same_accum(pad_ref, a.reshape(H, W, bott), wk_ref,
                                 l * KH * KW, bk_ref[l],
                                 H=H, W=W, KH=KH, KW=KW, c_in=bott, c_out=bott)
        y = jnp.dot(jax.nn.silu(h).astype(BF16), wb_ref[...],
                    preferred_element_type=F32) + bb_ref[...] + x      # (HW, Cin)
        y_b = y.astype(BF16)

        # ---- skip projection (1x1) ----
        if use_skip:
            s = jnp.dot(y_b, ws_ref[...], preferred_element_type=F32) + bs_ref[...]
            skip_ref[0] = s.astype(skip_ref.dtype)

        # ---- pool conv (kernel == stride), space-to-depth fused via a 0/1
        #      row-selection matmul (no XLA transpose / HBM bounce).
        if stride > 1:
            acc = jnp.zeros((HoWo, Cpool), F32) + bp_ref[...]
            for k in range(stride * stride):
                sel = p_ref[k * HoWo:(k + 1) * HoWo, :]                # (HoWo, HW) 0/1
                g = jnp.dot(sel, y_b, preferred_element_type=F32)      # gather rows of y
                acc = acc + jnp.dot(g.astype(BF16), wp_ref[k],
                                    preferred_element_type=F32)
            xout_ref[0] = acc.astype(xout_ref.dtype)
        else:
            xout_ref[0] = y.astype(xout_ref.dtype)

    return kernel


def _space_to_depth_select(H, W, stride):
    """0/1 matrix S of shape (stride*stride*HoWo, H*W):
       (S @ y)[k*HoWo + i*Wo + j] == y[(stride*i + sh)*W + stride*j + sw],
       with k = sh*stride + sw (matches wp.reshape(stride*stride, Cin, Cout))."""
    Ho, Wo = H // stride, W // stride
    HoWo = Ho * Wo
    S = np.zeros((stride * stride * HoWo, H * W), np.float32)
    for sh in range(stride):
        for sw in range(stride):
            k = sh * stride + sw
            for i in range(Ho):
                for j in range(Wo):
                    S[k * HoWo + i * Wo + j,
                      (stride * i + sh) * W + stride * j + sw] = 1.0
    return jnp.asarray(S, BF16)


def level_block_pallas(x2, blk, *, H, W):
    """One fused LevelBlockUp.  x2: (N, H*W, Cin) f32.
    Returns (x_out2, skip2_or_None); x_out2 is (N, (H//s)*(W//s), Cpool) if s>1."""
    N, HW, Cin = x2.shape
    assert HW == H * W
    convs = blk['res']
    wa, ba = convs[0]
    wb, bb = convs[-1]
    mids = convs[1:-1]
    n_layers = len(mids)
    assert n_layers >= 1
    KH, KW = mids[0][0].shape[0], mids[0][0].shape[1]
    bott = wa.shape[-1]
    stride = int(blk['strides'])
    use_skip = bool(blk['use_skip'])

    args = [
        x2,
        wa.reshape(Cin, bott).astype(BF16), ba.reshape(1, bott).astype(F32),
        jnp.concatenate([w.reshape(KH * KW, bott, bott) for (w, _) in mids],
                        axis=0).astype(BF16),
        jnp.stack([b.reshape(1, bott) for (_, b) in mids], axis=0).astype(F32),
        wb.reshape(bott, Cin).astype(BF16), bb.reshape(1, Cin).astype(F32),
    ]
    in_specs = [
        pl.BlockSpec((1, HW, Cin), lambda n: (n, 0, 0)),
        pl.BlockSpec((Cin, bott), lambda n: (0, 0)),
        pl.BlockSpec((1, bott), lambda n: (0, 0)),
        pl.BlockSpec((n_layers * KH * KW, bott, bott), lambda n: (0, 0, 0)),
        pl.BlockSpec((n_layers, 1, bott), lambda n: (0, 0, 0)),
        pl.BlockSpec((bott, Cin), lambda n: (0, 0)),
        pl.BlockSpec((1, Cin), lambda n: (0, 0)),
    ]

    Cskip = 0
    if use_skip:
        ws, bs = blk['skip']
        Cskip = ws.shape[-1]
        args += [ws.reshape(Cin, Cskip).astype(BF16), bs.reshape(1, Cskip).astype(F32)]
        in_specs += [pl.BlockSpec((Cin, Cskip), lambda n: (0, 0)),
                     pl.BlockSpec((1, Cskip), lambda n: (0, 0))]

    if stride > 1:
        assert H % stride == 0 and W % stride == 0
        wp, bp = blk['pool']
        Cpool = wp.shape[-1]
        Ho, Wo = H // stride, W // stride
        HoWo = Ho * Wo
        sel = _space_to_depth_select(H, W, stride)
        args += [sel,
                 wp.reshape(stride * stride, Cin, Cpool).astype(BF16),
                 bp.reshape(1, Cpool).astype(F32)]
        in_specs += [pl.BlockSpec((stride * stride * HoWo, HW), lambda n: (0, 0)),
                     pl.BlockSpec((stride * stride, Cin, Cpool), lambda n: (0, 0, 0)),
                     pl.BlockSpec((1, Cpool), lambda n: (0, 0))]
    else:
        Cpool = Cin
        HoWo = HW

    out_shape = [jax.ShapeDtypeStruct((N, HoWo, Cpool), F32)]
    out_specs = [pl.BlockSpec((1, HoWo, Cpool), lambda n: (n, 0, 0))]
    if use_skip:
        out_shape.append(jax.ShapeDtypeStruct((N, HW, Cskip), F32))
        out_specs.append(pl.BlockSpec((1, HW, Cskip), lambda n: (n, 0, 0)))

    kernel = _make_level_block_kernel(
        H=H, W=W, Cin=Cin, bott=bott, n_layers=n_layers, KH=KH, KW=KW,
        stride=stride, use_skip=use_skip, Cskip=Cskip, Cpool=Cpool)

    outs = pl.pallas_call(
        kernel,
        out_shape=out_shape,
        grid_spec=pltpu.PrefetchScalarGridSpec(
            num_scalar_prefetch=0,
            grid=(N,),
            in_specs=in_specs,
            out_specs=out_specs,
            scratch_shapes=[pltpu.VMEM((H + KH - 1, W + KW - 1, bott), F32)],
        ),
        compiler_params=pltpu.CompilerParams(dimension_semantics=("parallel",)),
    )(*args)
    x_out = outs[0]
    skip = outs[1] if use_skip else None
    return x_out, skip


# --------------------------- pure-JAX reference path --------------------------
# Same math as the kernels: bf16 matmul operands, f32 accumulation.
def conv2d_same_lax(x, w, b, *, apply_silu=False, residual=None):
    if apply_silu:
        x = jax.nn.silu(x)
    KH, KW = w.shape[0], w.shape[1]
    ph, pw = KH - 1, KW - 1
    y = jax.lax.conv_general_dilated(
        x.astype(BF16), w.astype(BF16), (1, 1),
        ((ph // 2, ph - ph // 2), (pw // 2, pw - pw // 2)),
        dimension_numbers=('NHWC', 'HWIO', 'NHWC'),
        preferred_element_type=F32) + b
    if residual is not None:
        y = y + residual
    return y


def pool_conv_lax(x, w, b, stride):
    return jax.lax.conv_general_dilated(
        x.astype(BF16), w.astype(BF16), (stride, stride), 'VALID',
        dimension_numbers=('NHWC', 'HWIO', 'NHWC'),
        preferred_element_type=F32) + b


def _residual_cell_lax(x, convs):
    h = x
    for (w, b) in convs[:-1]:
        h = conv2d_same_lax(h, w, b, apply_silu=True)
    w, b = convs[-1]
    return conv2d_same_lax(h, w, b, apply_silu=True, residual=x)


def _level_block_lax(x, blk):
    x = _residual_cell_lax(x, blk['res'])
    skip = None
    if blk['use_skip']:
        w, b = blk['skip']
        skip = conv2d_same_lax(x, w, b)
    if blk['strides'] > 1:
        w, b = blk['pool']
        x = pool_conv_lax(x, w, b, blk['strides'])
    return x, skip


def bottom_up_forward_ref(x_nchw, params):
    x = jnp.transpose(x_nchw, (0, 2, 3, 1)).astype(F32)
    w, b = params['input_conv']
    x = conv2d_same_lax(x, w, b)
    skips = []
    for level, down in zip(params['levels_up'], params['levels_up_downsample']):
        for blk in level:
            x, _ = _level_block_lax(x, blk)
        x, skip = _level_block_lax(x, down)
        skips.append(skip)
    return [jnp.transpose(s, (0, 3, 1, 2)) for s in skips[::-1]]


# ------------------------------- parameters -----------------------------------
def _init_conv(key, kh, kw, cin, cout, scale=1.0):
    kw_key, kb_key = jax.random.split(key)
    fan_in = kh * kw * cin
    w = jax.random.normal(kw_key, (kh, kw, cin, cout), F32) * (scale / math.sqrt(fan_in))
    b = 0.01 * jax.random.normal(kb_key, (cout,), F32)
    return w, b


def _init_residual_cell(key, in_f, bottleneck_ratio, kernel_size, n_layers, n_blocks,
                        use_1x1=True):
    bott = int(in_f * bottleneck_ratio)
    keys = jax.random.split(key, n_layers + 2)
    k1 = 1 if use_1x1 else kernel_size
    convs = [_init_conv(keys[0], k1, k1, in_f, bott)]
    for l in range(n_layers):
        convs.append(_init_conv(keys[1 + l], kernel_size, kernel_size, bott, bott))
    convs.append(_init_conv(keys[-1], k1, k1, bott, in_f, scale=math.sqrt(1.0 / n_blocks)))
    return convs


def _init_level_block(key, n_blocks, n_layers, in_f, filters, bottleneck_ratio,
                      kernel_size, strides, skip_filters, use_skip):
    k_res, k_skip, k_pool = jax.random.split(key, 3)
    blk = dict(strides=strides, use_skip=use_skip,
               res=_init_residual_cell(k_res, in_f, bottleneck_ratio, kernel_size,
                                       n_layers, n_blocks))
    if use_skip:
        blk['skip'] = _init_conv(k_skip, 1, 1, in_f, skip_filters)
    if strides > 1:
        blk['pool'] = _init_conv(k_pool, strides, strides, in_f, filters)
    return blk


def init_bottom_up(key, hp):
    in_channels_up = [hp['input_conv_filters']] + list(hp['up_filters'][:-1])
    n_levels = len(hp['up_strides'])
    keys = jax.random.split(key, 2 * n_levels + 1)
    params = dict(
        input_conv=_init_conv(keys[0], hp['input_kernel_size'], hp['input_kernel_size'],
                              hp['data_channels'], hp['input_conv_filters']),
        levels_up=[], levels_up_downsample=[])
    for i, stride in enumerate(hp['up_strides']):
        blk_keys = jax.random.split(keys[1 + 2 * i], hp['up_n_blocks_per_res'][i])
        params['levels_up'].append([
            _init_level_block(blk_keys[j], hp['up_n_blocks'][i], hp['up_n_layers'][i],
                              in_channels_up[i], hp['up_filters'][i],
                              hp['up_mid_filters_ratio'][i], hp['up_kernel_size'][i],
                              strides=1, skip_filters=hp['up_skip_filters'][i],
                              use_skip=False)
            for j in range(hp['up_n_blocks_per_res'][i])])
        params['levels_up_downsample'].append(
            _init_level_block(keys[2 + 2 * i], hp['up_n_blocks'][i], hp['up_n_layers'][i],
                              in_channels_up[i], hp['up_filters'][i],
                              hp['up_mid_filters_ratio'][i], hp['up_kernel_size'][i],
                              strides=stride, skip_filters=hp['up_skip_filters'][i],
                              use_skip=True))
    return params


# --------------------------------- forward ------------------------------------
def bottom_up_forward(x_nchw, params):
    """Pallas forward.  x_nchw: (N, C, H, W).  Returns skip list (NCHW), deepest first."""
    N, C, H, W = x_nchw.shape
    x2 = jnp.transpose(x_nchw, (0, 2, 3, 1)).reshape(N, H * W, C).astype(F32)
    w, b = params['input_conv']
    x2 = input_conv_pallas(x2, w, b, H=H, W=W)
    skips = []
    for level, down in zip(params['levels_up'], params['levels_up_downsample']):
        for blk in level:
            x2, _ = level_block_pallas(x2, blk, H=H, W=W)
        Hs, Ws = H, W
        x2, skip2 = level_block_pallas(x2, down, H=H, W=W)
        stride = int(down['strides'])
        if stride > 1:
            H, W = H // stride, W // stride
        Cskip = skip2.shape[-1]
        skips.append(jnp.transpose(skip2.reshape(N, Hs, Ws, Cskip), (0, 3, 1, 2)))
    return skips[::-1]


# ----------------------------------- main --------------------------------------
if __name__ == "__main__":
    key = jax.random.PRNGKey(0)
    k_p, k_x = jax.random.split(key)
    params = init_bottom_up(k_p, HP)
    x = jax.random.normal(k_x, (2, HP['data_channels'], 16, 16), jnp.float32)

    skips = jax.block_until_ready(bottom_up_forward(x, params))
    skips_ref = jax.block_until_ready(bottom_up_forward_ref(x, params))

    expected_shapes = [(2, HP['up_skip_filters'][1], 8, 8),
                       (2, HP['up_skip_filters'][0], 16, 16)]
    assert len(skips) == len(skips_ref) == len(HP['up_strides'])
    for s, r, shp in zip(skips, skips_ref, expected_shapes):
        assert s.shape == shp, (s.shape, shp)
        np.testing.assert_allclose(np.asarray(s), np.asarray(r), rtol=2e-2, atol=2e-2)

    print("KERNEL_OK")
</pallas_src>

<mosaic_0001>
module attributes {stable_mosaic.version = 11 : i64} {
  func.func @kernel(%arg0: i32, %arg1: memref<1x256x3xf32, #tpu.memory_space<vmem>>, %arg2: memref<9x3x16xbf16, #tpu.memory_space<vmem>>, %arg3: memref<1x16xf32, #tpu.memory_space<vmem>>, %arg4: memref<1x256x16xf32, #tpu.memory_space<vmem>>, %arg5: memref<18x18x3xf32, #tpu.memory_space<vmem>>) attributes {dimension_semantics = [#tpu.dimension_semantics<parallel>], iteration_bounds = array<i64: 2>, scalar_prefetch = 0 : i64, scratch_operands = 1 : i64, tpu.core_type = #tpu.core_type<tc>, window_params = [{transform_indices = @transform_0, window_bounds = array<i64: 1, 256, 3>}, {pipeline_mode = #tpu.pipeline_mode<synchronous>, transform_indices = @transform_1, window_bounds = array<i64: 9, 3, 16>}, {pipeline_mode = #tpu.pipeline_mode<synchronous>, transform_indices = @transform_2, window_bounds = array<i64: 1, 16>}, {transform_indices = @transform_3, window_bounds = array<i64: 1, 256, 16>}]} {
    %c0 = arith.constant 0 : index
    %c0_0 = arith.constant 0 : index
    %c0_1 = arith.constant 0 : index
    %0 = vector.load %arg1[%c0, %c0_0, %c0_1] : memref<1x256x3xf32, #tpu.memory_space<vmem>>, vector<1x256x3xf32>
    %1 = vector.shape_cast %0 : vector<1x256x3xf32> to vector<256x3xf32>
    %2 = vector.shape_cast %1 : vector<256x3xf32> to vector<16x16x3xf32>
    %c0_2 = arith.constant 0 : index
    %c0_3 = arith.constant 0 : index
    %3 = vector.load %arg3[%c0_2, %c0_3] : memref<1x16xf32, #tpu.memory_space<vmem>>, vector<1x16xf32>
    %cst = arith.constant 0.000000e+00 : f32
    %4 = vector.broadcast %cst : f32 to vector<18x18x3xf32>
    %c0_4 = arith.constant 0 : index
    %c0_5 = arith.constant 0 : index
    %c0_6 = arith.constant 0 : index
    %5 = vector.load %arg5[%c0_4, %c0_5, %c0_6] : memref<18x18x3xf32, #tpu.memory_space<vmem>>, vector<18x18x3xf32>
    tpu.vector_store %arg5[%c0_4, %c0_5, %c0_6], %4 {strides = array<i32>} : memref<18x18x3xf32, #tpu.memory_space<vmem>>, vector<18x18x3xf32>,
    %c1 = arith.constant 1 : index
    %c1_7 = arith.constant 1 : index
    %c0_8 = arith.constant 0 : index
    %6 = vector.load %arg5[%c1, %c1_7, %c0_8] : memref<18x18x3xf32, #tpu.memory_space<vmem>>, vector<16x16x3xf32>
    tpu.vector_store %arg5[%c1, %c1_7, %c0_8], %2 {strides = array<i32>} : memref<18x18x3xf32, #tpu.memory_space<vmem>>, vector<16x16x3xf32>,
    %cst_9 = arith.constant 0.000000e+00 : f32
    %7 = vector.broadcast %cst_9 : f32 to vector<256x16xf32>
    %8 = vector.broadcast %3 : vector<1x16xf32> to vector<256x16xf32>
    %9 = arith.addf %7, %8 : vector<256x16xf32>
    %c0_10 = arith.constant 0 : index
    %c0_11 = arith.constant 0 : index
    %c0_12 = arith.constant 0 : index
    %10 = vector.load %arg5[%c0_10, %c0_11, %c0_12] : memref<18x18x3xf32, #tpu.memory_space<vmem>>, vector<16x16x3xf32>
    %11 = vector.shape_cast %10 : vector<16x16x3xf32> to vector<256x3xf32>
    %12 = arith.truncf %11 : vector<256x3xf32> to vector<256x3xbf16>
    %c0_13 = arith.constant 0 : index
    %c0_14 = arith.constant 0 : index
    %c0_15 = arith.constant 0 : index
    %13 = vector.load %arg2[%c0_13, %c0_14, %c0_15] : memref<9x3x16xbf16, #tpu.memory_space<vmem>>, vector<1x3x16xbf16>
    %14 = vector.shape_cast %13 : vector<1x3x16xbf16> to vector<3x16xbf16>
    %cst_16 = arith.constant dense<0.000000e+00> : vector<256x16xf32>
    %15 = tpu.matmul %12, %14, %cst_16 {dimension_numbers = #tpu.dot_dimension_numbers<[1], [0], [0], [1], [0, 0, 1, 1], [], []>} : vector<256x3xbf16>, vector<3x16xbf16>, vector<256x16xf32> -> vector<256x16xf32>
    %16 = arith.addf %9, %15 : vector<256x16xf32>
    %c0_17 = arith.constant 0 : index
    %c1_18 = arith.constant 1 : index
    %c0_19 = arith.constant 0 : index
    %17 = vector.load %arg5[%c0_17, %c1_18, %c0_19] : memref<18x18x3xf32, #tpu.memory_space<vmem>>, vector<16x16x3xf32>
    %18 = vector.shape_cast %17 : vector<16x16x3xf32> to vector<256x3xf32>
    %19 = arith.truncf %18 : vector<256x3xf32> to vector<256x3xbf16>
    %c1_20 = arith.constant 1 : index
    %c0_21 = arith.constant 0 : index
    %c0_22 = arith.constant 0 : index
    %20 = vector.load %arg2[%c1_20, %c0_21, %c0_22] : memref<9x3x16xbf16, #tpu.memory_space<vmem>>, vector<1x3x16xbf16>
    %21 = vector.shape_cast %20 : vector<1x3x16xbf16> to vector<3x16xbf16>
    %cst_23 = arith.constant dense<0.000000e+00> : vector<256x16xf32>
    %22 = tpu.matmul %19, %21, %cst_23 {dimension_numbers = #tpu.dot_dimension_numbers<[1], [0], [0], [1], [0, 0, 1, 1], [], []>} : vector<256x3xbf16>, vector<3x16xbf16>, vector<256x16xf32> -> vector<256x16xf32>
    %23 = arith.addf %16, %22 : vector<256x16xf32>
    %c0_24 = arith.constant 0 : index
    %c2 = arith.constant 2 : index
    %c0_25 = arith.constant 0 : index
    %24 = vector.load %arg5[%c0_24, %c2, %c0_25] : memref<18x18x3xf32, #tpu.memory_space<vmem>>, vector<16x16x3xf32>
    %25 = vector.shape_cast %24 : vector<16x16x3xf32> to vector<256x3xf32>
    %26 = arith.truncf %25 : vector<256x3xf32> to vector<256x3xbf16>
    %c2_26 = arith.constant 2 : index
    %c0_27 = arith.constant 0 : index
    %c0_28 = arith.constant 0 : index
    %27 = vector.load %arg2[%c2_26, %c0_27, %c0_28] : memref<9x3x16xbf16, #tpu.memory_space<vmem>>, vector<1x3x16xbf16>
    %28 = vector.shape_cast %27 : vector<1x3x16xbf16> to vector<3x16xbf16>
    %cst_29 = arith.constant dense<0.000000e+00> : vector<256x16xf32>
    %29 = tpu.matmul %26, %28, %cst_29 {dimension_numbers = #tpu.dot_dimension_numbers<[1], [0], [0], [1], [0, 0, 1, 1], [], []>} : vector<256x3xbf16>, vector<3x16xbf16>, vector<256x16xf32> -> vector<256x16xf32>
    %30 = arith.addf %23, %29 : vector<256x16xf32>
    %c1_30 = arith.constant 1 : index
    %c0_31 = arith.constant 0 : index
    %c0_32 = arith.constant 0 : index
    %31 = vector.load %arg5[%c1_30, %c0_31, %c0_32] : memref<18x18x3xf32, #tpu.memory_space<vmem>>, vector<16x16x3xf32>
    %32 = vector.shape_cast %31 : vector<16x16x3xf32> to vector<256x3xf32>
    %33 = arith.truncf %32 : vector<256x3xf32> to vector<256x3xbf16>
    %c3 = arith.constant 3 : index
    %c0_33 = arith.constant 0 : index
    %c0_34 = arith.constant 0 : index
    %34 = vector.load %arg2[%c3, %c0_33, %c0_34] : memref<9x3x16xbf16, #tpu.memory_space<vmem>>, vector<1x3x16xbf16>
    %35 = vector.shape_cast %34 : vector<1x3x16xbf16> to vector<3x16xbf16>
    %cst_35 = arith.constant dense<0.000000e+00> : vector<256x16xf32>
    %36 = tpu.matmul %33, %35, %cst_35 {dimension_numbers = #tpu.dot_dimension_numbers<[1], [0], [0], [1], [0, 0, 1, 1], [], []>} : vector<256x3xbf16>, vector<3x16xbf16>, vector<256x16xf32> -> vector<256x16xf32>
    %37 = arith.addf %30, %36 : vector<256x16xf32>
    %c1_36 = arith.constant 1 : index
    %c1_37 = arith.constant 1 : index
    %c0_38 = arith.constant 0 : index
    %38 = vector.load %arg5[%c1_36, %c1_37, %c0_38] : memref<18x18x3xf32, #tpu.memory_space<vmem>>, vector<16x16x3xf32>
    %39 = vector.shape_cast %38 : vector<16x16x3xf32> to vector<256x3xf32>
    %40 = arith.truncf %39 : vector<256x3xf32> to vector<256x3xbf16>
    %c4 = arith.constant 4 : index
    %c0_39 = arith.constant 0 : index
    %c0_40 = arith.constant 0 : index
    %41 = vector.load %arg2[%c4, %c0_39, %c0_40] : memref<9x3x16xbf16, #tpu.memory_space<vmem>>, vector<1x3x16xbf16>
    %42 = vector.shape_cast %41 : vector<1x3x16xbf16> to vector<3x16xbf16>
    %cst_41 = arith.constant dense<0.000000e+00> : vector<256x16xf32>
    %43 = tpu.matmul %40, %42, %cst_41 {dimension_numbers = #tpu.dot_dimension_numbers<[1], [0], [0], [1], [0, 0, 1, 1], [], []>} : vector<256x3xbf16>, vector<3x16xbf16>, vector<256x16xf32> -> vector<256x16xf32>
    %44 = arith.addf %37, %43 : vector<256x16xf32>
    %c1_42 = arith.constant 1 : index
    %c2_43 = arith.constant 2 : index
    %c0_44 = arith.constant 0 : index
    %45 = vector.load %arg5[%c1_42, %c2_43, %c0_44] : memref<18x18x3xf32, #tpu.memory_space<vmem>>, vector<16x16x3xf32>
    %46 = vector.shape_cast %45 : vector<16x16x3xf32> to vector<256x3xf32>
    %47 = arith.truncf %46 : vector<256x3xf32> to vector<256x3xbf16>
    %c5 = arith.constant 5 : index
    %c0_45 = arith.constant 0 : index
    %c0_46 = arith.constant 0 : index
    %48 = vector.load %arg2[%c5, %c0_45, %c0_46] : memref<9x3x16xbf16, #tpu.memory_space<vmem>>, vector<1x3x16xbf16>
    %49 = vector.shape_cast %48 : vector<1x3x16xbf16> to vector<3x16xbf16>
    %cst_47 = arith.constant dense<0.000000e+00> : vector<256x16xf32>
    %50 = tpu.matmul %47, %49, %cst_47 {dimension_numbers = #tpu.dot_dimension_numbers<[1], [0], [0], [1], [0, 0, 1, 1], [], []>} : vector<256x3xbf16>, vector<3x16xbf16>, vector<256x16xf32> -> vector<256x16xf32>
    %51 = arith.addf %44, %50 : vector<256x16xf32>
    %c2_48 = arith.constant 2 : index
    %c0_49 = arith.constant 0 : index
    %c0_50 = arith.constant 0 : index
    %52 = vector.load %arg5[%c2_48, %c0_49, %c0_50] : memref<18x18x3xf32, #tpu.memory_space<vmem>>, vector<16x16x3xf32>
    %53 = vector.shape_cast %52 : vector<16x16x3xf32> to vector<256x3xf32>
    %54 = arith.truncf %53 : vector<256x3xf32> to vector<256x3xbf16>
    %c6 = arith.constant 6 : index
    %c0_51 = arith.constant 0 : index
    %c0_52 = arith.constant 0 : index
    %55 = vector.load %arg2[%c6, %c0_51, %c0_52] : memref<9x3x16xbf16, #tpu.memory_space<vmem>>, vector<1x3x16xbf16>
    %56 = vector.shape_cast %55 : vector<1x3x16xbf16> to vector<3x16xbf16>
    %cst_53 = arith.constant dense<0.000000e+00> : vector<256x16xf32>
    %57 = tpu.matmul %54, %56, %cst_53 {dimension_numbers = #tpu.dot_dimension_numbers<[1], [0], [0], [1], [0, 0, 1, 1], [], []>} : vector<256x3xbf16>, vector<3x16xbf16>, vector<256x16xf32> -> vector<256x16xf32>
    %58 = arith.addf %51, %57 : vector<256x16xf32>
    %c2_54 = arith.constant 2 : index
    %c1_55 = arith.constant 1 : index
    %c0_56 = arith.constant 0 : index
    %59 = vector.load %arg5[%c2_54, %c1_55, %c0_56] : memref<18x18x3xf32, #tpu.memory_space<vmem>>, vector<16x16x3xf32>
    %60 = vector.shape_cast %59 : vector<16x16x3xf32> to vector<256x3xf32>
    %61 = arith.truncf %60 : vector<256x3xf32> to vector<256x3xbf16>
    %c7 = arith.constant 7 : index
    %c0_57 = arith.constant 0 : index
    %c0_58 = arith.constant 0 : index
    %62 = vector.load %arg2[%c7, %c0_57, %c0_58] : memref<9x3x16xbf16, #tpu.memory_space<vmem>>, vector<1x3x16xbf16>
    %63 = vector.shape_cast %62 : vector<1x3x16xbf16> to vector<3x16xbf16>
    %cst_59 = arith.constant dense<0.000000e+00> : vector<256x16xf32>
    %64 = tpu.matmul %61, %63, %cst_59 {dimension_numbers = #tpu.dot_dimension_numbers<[1], [0], [0], [1], [0, 0, 1, 1], [], []>} : vector<256x3xbf16>, vector<3x16xbf16>, vector<256x16xf32> -> vector<256x16xf32>
    %65 = arith.addf %58, %64 : vector<256x16xf32>
    %c2_60 = arith.constant 2 : index
    %c2_61 = arith.constant 2 : index
    %c0_62 = arith.constant 0 : index
    %66 = vector.load %arg5[%c2_60, %c2_61, %c0_62] : memref<18x18x3xf32, #tpu.memory_space<vmem>>, vector<16x16x3xf32>
    %67 = vector.shape_cast %66 : vector<16x16x3xf32> to vector<256x3xf32>
    %68 = arith.truncf %67 : vector<256x3xf32> to vector<256x3xbf16>
    %c8 = arith.constant 8 : index
    %c0_63 = arith.constant 0 : index
    %c0_64 = arith.constant 0 : index
    %69 = vector.load %arg2[%c8, %c0_63, %c0_64] : memref<9x3x16xbf16, #tpu.memory_space<vmem>>, vector<1x3x16xbf16>
    %70 = vector.shape_cast %69 : vector<1x3x16xbf16> to vector<3x16xbf16>
    %cst_65 = arith.constant dense<0.000000e+00> : vector<256x16xf32>
    %71 = tpu.matmul %68, %70, %cst_65 {dimension_numbers = #tpu.dot_dimension_numbers<[1], [0], [0], [1], [0, 0, 1, 1], [], []>} : vector<256x3xbf16>, vector<3x16xbf16>, vector<256x16xf32> -> vector<256x16xf32>
    %72 = arith.addf %65, %71 : vector<256x16xf32>
    %c0_66 = arith.constant 0 : index
    %c0_67 = arith.constant 0 : index
    %c0_68 = arith.constant 0 : index
    %73 = vector.load %arg4[%c0_66, %c0_67, %c0_68] : memref<1x256x16xf32, #tpu.memory_space<vmem>>, vector<1x256x16xf32>
    %74 = vector.shape_cast %73 : vector<1x256x16xf32> to vector<256x16xf32>
    %75 = vector.shape_cast %72 : vector<256x16xf32> to vector<1x256x16xf32>
    tpu.vector_store %arg4[%c0_66, %c0_67, %c0_68], %75 {strides = array<i32>} : memref<1x256x16xf32, #tpu.memory_space<vmem>>, vector<1x256x16xf32>,
    return
  }
  func.func @transform_0(%arg0: i32) -> (i32, i32, i32) {
    %c0_i32 = arith.constant 0 : i32
    %c0_i32_0 = arith.constant 0 : i32
    %c0_i32_1 = arith.constant 0 : i32
    return %arg0, %c0_i32, %c0_i32_0 : i32, i32, i32
  }
  func.func @transform_1(%arg0: i32) -> (i32, i32, i32) {
    %c0_i32 = arith.constant 0 : i32
    %c0_i32_0 = arith.constant 0 : i32
    %c0_i32_1 = arith.constant 0 : i32
    %c0_i32_2 = arith.constant 0 : i32
    return %c0_i32, %c0_i32_0, %c0_i32_1 : i32, i32, i32
  }
  func.func @transform_2(%arg0: i32) -> (i32, i32) {
    %c0_i32 = arith.constant 0 : i32
    %c0_i32_0 = arith.constant 0 : i32
    %c0_i32_1 = arith.constant 0 : i32
    return %c0_i32, %c0_i32_0 : i32, i32
  }
  func.func @transform_3(%arg0: i32) -> (i32, i32, i32) {
    %c0_i32 = arith.constant 0 : i32
    %c0_i32_0 = arith.constant 0 : i32
    %c0_i32_1 = arith.constant 0 : i32
    return %arg0, %c0_i32, %c0_i32_0 : i32, i32, i32
  }
}

</mosaic_0001>

<llo_original>
// kernel: tpu_custom_call.1
$region0: #{tpu_custom_call.1}
  #allocation0 [shape = 'u32[]', space=smem, size = 0x4, offset = 0x4, fixed_abs, tag = 'smem constant byte address 0x4 - core index']
  #allocation1 [shape = 'u32[72,128]{1,0:T(1,128)}', space=vmem, size = 0x9000, scoped, tag = 'internal scratch']
  #allocation2 [shape = 'f32[18,18,3]{2,1,0:T(8,128)}', space=vmem, size = 0x36000, scoped, tag = 'scratch operand']
  %s0 = inlined_call_operand.vmem [shape: f32[2,256,3], index: 0, kind: input, shape index: {}]
  %s1 = inlined_call_operand.vmem [shape: bf16[9,3,16], index: 1, kind: input, shape index: {}]
  %s2 = inlined_call_operand.vmem [shape: f32[1,16], index: 2, kind: input, shape index: {}]
  %s3 = inlined_call_operand.vmem [shape: f32[2,256,16], index: 3, kind: output, shape index: {}]
  %s4 = sld [smem:[#allocation0]]
  $region45: #{tpu_custom_call.1} parent=0
    _
  %s6 = ssub.s32 1, %s4
  %s7 = scalar_select 0, %s6, %s4
  loop: start=0, step=1, limit=4
  $region2: #{tpu_custom_call.1} parent=0 // loop_pre_header
    _
  $region3: #{tpu_custom_call.1} parent=0 // loop_header
    %s9 = sphi 0, %s13
    %p10 = scmp.ge.s32.totalorder %s9, 4
    %s19 = sphi 0, %s21
    %s22 = sphi 0, %s19
    %s23 = sphi 0, %s22
    %s39 = sphi 0, %s23
    %s43 = sphi 0, %s43
    %s45 = sphi 0, %s43
    %s46 = sphi 0, %s45
    %s60 = sphi 0, %s46
    %s64 = sphi 0, %s64
    %s66 = sphi 0, %s64
    %s67 = sphi 0, %s66
    %s81 = sphi 0, %s67
    %s87 = sphi 0, %s89
    %s90 = sphi 0, %s87
    %s91 = sphi 0, %s90
    %s107 = sphi 0, %s91
  $region4: #{tpu_custom_call.1} parent=0 // loop_header_branch
    %12 = sbr.rel (%p10) target = $region8
  $region5: #{tpu_custom_call.1} parent=0 // loop_body
    %s14 = ssub.s32 %s9, 1
    %s15 = ssub.s32 %s9, 2
    %s16 = sadd.s32 %s9, 1
    %s17 = ssub.s32 %s9, %s16
    %p18 = scmp.eq.s32.totalorder %s17, 0
    %s20 = sadd.s32 %s19, 1
    %s21 = scalar_select %p18, %s19, %s20
    %p24 = pneg %p18
    %p25 = scmp.eq.s32.totalorder %s9, 1
    %p26 = por %p24, %p25
    %p27 = scmp.ne.s32.totalorder %s19, %s22
    %p28 = scmp.eq.s32.totalorder %s9, 0
    %p29 = por %p27, %p28
    %p30 = scmp.ne.s32.totalorder %s19, %s22
    %p31 = scmp.eq.s32.totalorder %s14, 1
    %p32 = por %p30, %p31
    %p33 = scmp.ne.s32.totalorder %s22, %s23
    %p34 = scmp.eq.s32.totalorder %s14, 0
    %p35 = por %p33, %p34
    %p36 = scmp.ne.s32.totalorder %s22, %s23
    %p37 = scmp.eq.s32.totalorder %s15, 1
    %p38 = por %p36, %p37
    %p40 = scmp.ne.s32.totalorder %s23, %s39
    %p41 = scmp.eq.s32.totalorder %s15, 0
    %p42 = por %p40, %p41
    %s44 = sadd.s32 %s43, 1
    %p47 = scmp.eq.s32.totalorder %s9, 1
    %p48 = scmp.ne.s32.totalorder %s43, %s45
    %p49 = scmp.eq.s32.totalorder %s9, 0
    %p50 = por %p48, %p49
    %p51 = scmp.ne.s32.totalorder %s43, %s45
    %p52 = scmp.eq.s32.totalorder %s14, 1
    %p53 = por %p51, %p52
    %p54 = scmp.ne.s32.totalorder %s45, %s46
    %p55 = scmp.eq.s32.totalorder %s14, 0
    %p56 = por %p54, %p55
    %p57 = scmp.ne.s32.totalorder %s45, %s46
    %p58 = scmp.eq.s32.totalorder %s15, 1
    %p59 = por %p57, %p58
    %p61 = scmp.ne.s32.totalorder %s46, %s60
    %p62 = scmp.eq.s32.totalorder %s15, 0
    %p63 = por %p61, %p62
    %s65 = sadd.s32 %s64, 1
    %p68 = scmp.eq.s32.totalorder %s9, 1
    %p69 = scmp.ne.s32.totalorder %s64, %s66
    %p70 = scmp.eq.s32.totalorder %s9, 0
    %p71 = por %p69, %p70
    %p72 = scmp.ne.s32.totalorder %s64, %s66
    %p73 = scmp.eq.s32.totalorder %s14, 1
    %p74 = por %p72, %p73
    %p75 = scmp.ne.s32.totalorder %s66, %s67
    %p76 = scmp.eq.s32.totalorder %s14, 0
    %p77 = por %p75, %p76
    %p78 = scmp.ne.s32.totalorder %s66, %s67
    %p79 = scmp.eq.s32.totalorder %s15, 1
    %p80 = por %p78, %p79
    %p82 = scmp.ne.s32.totalorder %s67, %s81
    %p83 = scmp.eq.s32.totalorder %s15, 0
    %p84 = por %p82, %p83
    %s85 = ssub.s32 %s9, %s16
    %p86 = scmp.eq.s32.totalorder %s85, 0
    %s88 = sadd.s32 %s87, 1
    %s89 = scalar_select %p86, %s87, %s88
    %p92 = pneg %p86
    %p93 = scmp.eq.s32.totalorder %s9, 1
    %p94 = por %p92, %p93
    %p95 = scmp.ne.s32.totalorder %s87, %s90
    %p96 = scmp.eq.s32.totalorder %s9, 0
    %p97 = por %p95, %p96
    %p98 = scmp.ne.s32.totalorder %s87, %s90
    %p99 = scmp.eq.s32.totalorder %s14, 1
    %p100 = por %p98, %p99
    %p101 = scmp.ne.s32.totalorder %s90, %s91
    %p102 = scmp.eq.s32.totalorder %s14, 0
    %p103 = por %p101, %p102
    %p104 = scmp.ne.s32.totalorder %s90, %s91
    %p105 = scmp.eq.s32.totalorder %s15, 1
    %p106 = por %p104, %p105
    %p108 = scmp.ne.s32.totalorder %s91, %s107
    %p109 = scmp.eq.s32.totalorder %s15, 0
    %p110 = por %p108, %p109
    %p111 = scmp.le.s32.totalorder 1, %s9
    %p112 = scmp.lt.s32.totalorder %s9, 3
    %p113 = pnand %p111, %p112
    %p114 = pneg %p113
    // Predicated region
    $region9: #{tpu_custom_call.1} parent=5 // pred_check
      _
    $region10: #{tpu_custom_call.1} parent=5 // pred_check_branch
      %116 = sbr.rel (%p113) target = $region12
    $region11: #{tpu_custom_call.1} parent=5 // pred_region
      %s117 = ssub.s32 %s9, 1
      // Predicated region
      $region13: #{tpu_custom_call.1} parent=11 // pred_check
        %p118 = pneg %p56
      $region14: #{tpu_custom_call.1} parent=11 // pred_check_branch
        %120 = sbr.rel (%p118) target = $region16
      $region15: #{tpu_custom_call.1} parent=11 // pred_region
        _
      $region16: #{tpu_custom_call.1} parent=11 // pred_fallthru
        _
      // Predicated region
      $region17: #{tpu_custom_call.1} parent=11 // pred_check
        %p121 = pneg %p77
      $region18: #{tpu_custom_call.1} parent=11 // pred_check_branch
        %123 = sbr.rel (%p121) target = $region20
      $region19: #{tpu_custom_call.1} parent=11 // pred_region
        _
      $region20: #{tpu_custom_call.1} parent=11 // pred_fallthru
        _
    $region12: #{tpu_custom_call.1} parent=5 // pred_fallthru
      _
    %p124 = scmp.lt.s32.totalorder %s9, 2
    // Predicated region
    $region21: #{tpu_custom_call.1} parent=5 // pred_check
      %p125 = pneg %p124
    $region22: #{tpu_custom_call.1} parent=5 // pred_check_branch
      %127 = sbr.rel (%p125) target = $region24
    $region23: #{tpu_custom_call.1} parent=5 // pred_region
      // Predicated region
      $region25: #{tpu_custom_call.1} parent=23 // pred_check
        %p128 = pneg %p29
      $region26: #{tpu_custom_call.1} parent=23 // pred_check_branch
        %130 = sbr.rel (%p128) target = $region28
      $region27: #{tpu_custom_call.1} parent=23 // pred_region
        %p131 = scmp.lt.s32.totalorder %s9, 1
        %s132 = scalar_select %p131, %s9, 1
        %s133 = smul.addr %s132, 32
        %s134 = smul.addr %s133, 8
        %s135 = scalar_lea.vmem %s0, %s134
      $region28: #{tpu_custom_call.1} parent=23 // pred_fallthru
        _
    $region24: #{tpu_custom_call.1} parent=5 // pred_fallthru
      _
    %p136 = scmp.le.s32.totalorder 1, %s9
    %p137 = scmp.lt.s32.totalorder %s9, 3
    %p138 = pnand %p136, %p137
    %p139 = pneg %p138
    // Predicated region
    $region29: #{tpu_custom_call.1} parent=5 // pred_check
      _
    $region30: #{tpu_custom_call.1} parent=5 // pred_check_branch
      %141 = sbr.rel (%p138) target = $region32
    $region31: #{tpu_custom_call.1} parent=5 // pred_region
      %s142 = ssub.s32 %s9, 1
      %p143 = scmp.lt.s32.totalorder %s14, 1
      %s144 = scalar_select %p143, %s14, 1
      %s145 = smul.addr %s144, 32
      %s146 = smul.addr %s145, 8
      %s147 = scalar_lea.vmem %s0, %s146
      %p148 = pneg %p35
      %p149 = pneg %p32
      %p150 = pneg %p56
      %p151 = pneg %p53
      %p152 = pneg %p77
      %p153 = pneg %p74
      %p154 = pneg %p103
      %p155 = pneg %p100
      %p156 = scmp.lt.s32.totalorder %s14, 1
      %s157 = scalar_select %p156, %s14, 1
      %s158 = smul.addr %s157, 32
      %s159 = smul.addr %s158, 8
      %s160 = scalar_lea.vmem %s3, %s159
      %p161 = scmp.lt.s32.totalorder %s14, 1
      %s162 = scalar_select %p161, %s14, 1
      %s163 = smul.addr %s162, 32
      %s164 = smul.addr %s163, 8
      %s165 = scalar_lea.vmem %s0, %s164
      %p166 = scmp.lt.s32.totalorder %s14, 1
      %s167 = scalar_select %p166, %s14, 1
      %s168 = smul.addr %s167, 32
      %s169 = smul.addr %s168, 8
      %s170 = scalar_lea.vmem %s3, %s169
      %v172 = vld [vmem:[%s165] sm:$0xff]
      %v173 = vld [vmem:[%s165 + $0x8] sm:$0xff]
      %v174 = vld [vmem:[%s165 + $0x10] sm:$0xff]
      %v175 = vld [vmem:[%s165 + $0x18] sm:$0xff]
      %v176 = vld [vmem:[%s165 + $0x20] sm:$0xff]
      %v177 = vld [vmem:[%s165 + $0x28] sm:$0xff]
      %v178 = vld [vmem:[%s165 + $0x30] sm:$0xff]
      %v179 = vld [vmem:[%s165 + $0x38] sm:$0xff]
      %v180 = vld [vmem:[%s165 + $0x40] sm:$0xff]
      %v181 = vld [vmem:[%s165 + $0x48] sm:$0xff]
      %v182 = vld [vmem:[%s165 + $0x50] sm:$0xff]
      %v183 = vld [vmem:[%s165 + $0x58] sm:$0xff]
      %v184 = vld [vmem:[%s165 + $0x60] sm:$0xff]
      %v185 = vld [vmem:[%s165 + $0x68] sm:$0xff]
      %v186 = vld [vmem:[%s165 + $0x70] sm:$0xff]
      %v187 = vld [vmem:[%s165 + $0x78] sm:$0xff]
      %v188 = vld [vmem:[%s165 + $0x80] sm:$0xff]
      %v189 = vld [vmem:[%s165 + $0x88] sm:$0xff]
      %v190 = vld [vmem:[%s165 + $0x90] sm:$0xff]
      %v191 = vld [vmem:[%s165 + $0x98] sm:$0xff]
      %v192 = vld [vmem:[%s165 + $0xa0] sm:$0xff]
      %v193 = vld [vmem:[%s165 + $0xa8] sm:$0xff]
      %v194 = vld [vmem:[%s165 + $0xb0] sm:$0xff]
      %v195 = vld [vmem:[%s165 + $0xb8] sm:$0xff]
      %v196 = vld [vmem:[%s165 + $0xc0] sm:$0xff]
      %v197 = vld [vmem:[%s165 + $0xc8] sm:$0xff]
      %v198 = vld [vmem:[%s165 + $0xd0] sm:$0xff]
      %v199 = vld [vmem:[%s165 + $0xd8] sm:$0xff]
      %v200 = vld [vmem:[%s165 + $0xe0] sm:$0xff]
      %v201 = vld [vmem:[%s165 + $0xe8] sm:$0xff]
      %v202 = vld [vmem:[%s165 + $0xf0] sm:$0xff]
      %v203 = vld [vmem:[%s165 + $0xf8] sm:$0xff]
      %v204 = vld [vmem:[%s2] sm:$0x1]
      %vm205 = vcmask 23552
      %206 = vst.msk [vmem:[#allocation2] sm:$0xff] %vm205, 0.0
      %207 = vst.msk [vmem:[#allocation2 + $0x8] sm:$0xff] %vm205, 0.0
      %vm208 = vcmask 17408
      %209 = vst.msk [vmem:[#allocation2 + $0x10] sm:$0x3] %vm208, 0.0
      %210 = vst.msk [vmem:[#allocation2 + $0x18] sm:$0xff] %vm205, 0.0
      %211 = vst.msk [vmem:[#allocation2 + $0x20] sm:$0xff] %vm205, 0.0
      %212 = vst.msk [vmem:[#allocation2 + $0x28] sm:$0x3] %vm208, 0.0
      %213 = vst.msk [vmem:[#allocation2 + $0x30] sm:$0xff] %vm205, 0.0
      %214 = vst.msk [vmem:[#allocation2 + $0x38] sm:$0xff] %vm205, 0.0
      %215 = vst.msk [vmem:[#allocation2 + $0x40] sm:$0x3] %vm208, 0.0
      %216 = vst.msk [vmem:[#allocation2 + $0x48] sm:$0xff] %vm205, 0.0
      %217 = vst.msk [vmem:[#allocation2 + $0x50] sm:$0xff] %vm205, 0.0
      %218 = vst.msk [vmem:[#allocation2 + $0x58] sm:$0x3] %vm208, 0.0
      %219 = vst.msk [vmem:[#allocation2 + $0x60] sm:$0xff] %vm205, 0.0
      %220 = vst.msk [vmem:[#allocation2 + $0x68] sm:$0xff] %vm205, 0.0
      %221 = vst.msk [vmem:[#allocation2 + $0x70] sm:$0x3] %vm208, 0.0
      %222 = vst.msk [vmem:[#allocation2 + $0x78] sm:$0xff] %vm205, 0.0
      %223 = vst.msk [vmem:[#allocation2 + $0x80] sm:$0xff] %vm205, 0.0
      %224 = vst.msk [vmem:[#allocation2 + $0x88] sm:$0x3] %vm208, 0.0
      %225 = vst.msk [vmem:[#allocation2 + $0x90] sm:$0xff] %vm205, 0.0
      %226 = vst.msk [vmem:[#allocation2 + $0x98] sm:$0xff] %vm205, 0.0
      %227 = vst.msk [vmem:[#allocation2 + $0xa0] sm:$0x3] %vm208, 0.0
      %228 = vst.msk [vmem:[#allocation2 + $0xa8] sm:$0xff] %vm205, 0.0
      %229 = vst.msk [vmem:[#allocation2 + $0xb0] sm:$0xff] %vm205, 0.0
      %230 = vst.msk [vmem:[#allocation2 + $0xb8] sm:$0x3] %vm208, 0.0
      %231 = vst.msk [vmem:[#allocation2 + $0xc0] sm:$0xff] %vm205, 0.0
      %232 = vst.msk [vmem:[#allocation2 + $0xc8] sm:$0xff] %vm205, 0.0
      %233 = vst.msk [vmem:[#allocation2 + $0xd0] sm:$0x3] %vm208, 0.0
      %234 = vst.msk [vmem:[#allocation2 + $0xd8] sm:$0xff] %vm205, 0.0
      %235 = vst.msk [vmem:[#allocation2 + $0xe0] sm:$0xff] %vm205, 0.0
      %236 = vst.msk [vmem:[#allocation2 + $0xe8] sm:$0x3] %vm208, 0.0
      %237 = vst.msk [vmem:[#allocation2 + $0xf0] sm:$0xff] %vm205, 0.0
      %238 = vst.msk [vmem:[#allocation2 + $0xf8] sm:$0xff] %vm205, 0.0
      %239 = vst.msk [vmem:[#allocation2 + $0x100] sm:$0x3] %vm208, 0.0
      %240 = vst.msk [vmem:[#allocation2 + $0x108] sm:$0xff] %vm205, 0.0
      %241 = vst.msk [vmem:[#allocation2 + $0x110] sm:$0xff] %vm205, 0.0
      %242 = vst.msk [vmem:[#allocation2 + $0x118] sm:$0x3] %vm208, 0.0
      %243 = vst.msk [vmem:[#allocation2 + $0x120] sm:$0xff] %vm205, 0.0
      %244 = vst.msk [vmem:[#allocation2 + $0x128] sm:$0xff] %vm205, 0.0
      %245 = vst.msk [vmem:[#allocation2 + $0x130] sm:$0x3] %vm208, 0.0
      %246 = vst.msk [vmem:[#allocation2 + $0x138] sm:$0xff] %vm205, 0.0
      %247 = vst.msk [vmem:[#allocation2 + $0x140] sm:$0xff] %vm205, 0.0
      %248 = vst.msk [vmem:[#allocation2 + $0x148] sm:$0x3] %vm208, 0.0
      %249 = vst.msk [vmem:[#allocation2 + $0x150] sm:$0xff] %vm205, 0.0
      %250 = vst.msk [vmem:[#allocation2 + $0x158] sm:$0xff] %vm205, 0.0
      %251 = vst.msk [vmem:[#allocation2 + $0x160] sm:$0x3] %vm208, 0.0
      %252 = vst.msk [vmem:[#allocation2 + $0x168] sm:$0xff] %vm205, 0.0
      %253 = vst.msk [vmem:[#allocation2 + $0x170] sm:$0xff] %vm205, 0.0
      %254 = vst.msk [vmem:[#allocation2 + $0x178] sm:$0x3] %vm208, 0.0
      %255 = vst.msk [vmem:[#allocation2 + $0x180] sm:$0xff] %vm205, 0.0
      %256 = vst.msk [vmem:[#allocation2 + $0x188] sm:$0xff] %vm205, 0.0
      %257 = vst.msk [vmem:[#allocation2 + $0x190] sm:$0x3] %vm208, 0.0
      %258 = vst.msk [vmem:[#allocation2 + $0x198] sm:$0xff] %vm205, 0.0
      %259 = vst.msk [vmem:[#allocation2 + $0x1a0] sm:$0xff] %vm205, 0.0
      %260 = vst.msk [vmem:[#allocation2 + $0x1a8] sm:$0x3] %vm208, 0.0
      %s261 = scalar_lea.vmem [#allocation2], 24
      %262 = vst.msk [vmem:[%s261 + $0x1] sm:$0xff] %vm205, %v172
      %263 = vst.msk [vmem:[%s261 + $0x9] sm:$0xff] %vm205, %v173
      %264 = vst.msk [vmem:[%s261 + $0x19] sm:$0xff] %vm205, %v174
      %265 = vst.msk [vmem:[%s261 + $0x21] sm:$0xff] %vm205, %v175
      %266 = vst.msk [vmem:[%s261 + $0x31] sm:$0xff] %vm205, %v176
      %267 = vst.msk [vmem:[%s261 + $0x39] sm:$0xff] %vm205, %v177
      %268 = vst.msk [vmem:[%s261 + $0x49] sm:$0xff] %vm205, %v178
      %269 = vst.msk [vmem:[%s261 + $0x51] sm:$0xff] %vm205, %v179
      %270 = vst.msk [vmem:[%s261 + $0x61] sm:$0xff] %vm205, %v180
      %271 = vst.msk [vmem:[%s261 + $0x69] sm:$0xff] %vm205, %v181
      %272 = vst.msk [vmem:[%s261 + $0x79] sm:$0xff] %vm205, %v182
      %273 = vst.msk [vmem:[%s261 + $0x81] sm:$0xff] %vm205, %v183
      %274 = vst.msk [vmem:[%s261 + $0x91] sm:$0xff] %vm205, %v184
      %275 = vst.msk [vmem:[%s261 + $0x99] sm:$0xff] %vm205, %v185
      %276 = vst.msk [vmem:[%s261 + $0xa9] sm:$0xff] %vm205, %v186
      %277 = vst.msk [vmem:[%s261 + $0xb1] sm:$0xff] %vm205, %v187
      %278 = vst.msk [vmem:[%s261 + $0xc1] sm:$0xff] %vm205, %v188
      %279 = vst.msk [vmem:[%s261 + $0xc9] sm:$0xff] %vm205, %v189
      %280 = vst.msk [vmem:[%s261 + $0xd9] sm:$0xff] %vm205, %v190
      %281 = vst.msk [vmem:[%s261 + $0xe1] sm:$0xff] %vm205, %v191
      %282 = vst.msk [vmem:[%s261 + $0xf1] sm:$0xff] %vm205, %v192
      %283 = vst.msk [vmem:[%s261 + $0xf9] sm:$0xff] %vm205, %v193
      %284 = vst.msk [vmem:[%s261 + $0x109] sm:$0xff] %vm205, %v194
      %285 = vst.msk [vmem:[%s261 + $0x111] sm:$0xff] %vm205, %v195
      %286 = vst.msk [vmem:[%s261 + $0x121] sm:$0xff] %vm205, %v196
      %287 = vst.msk [vmem:[%s261 + $0x129] sm:$0xff] %vm205, %v197
      %288 = vst.msk [vmem:[%s261 + $0x139] sm:$0xff] %vm205, %v198
      %289 = vst.msk [vmem:[%s261 + $0x141] sm:$0xff] %vm205, %v199
      %290 = vst.msk [vmem:[%s261 + $0x151] sm:$0xff] %vm205, %v200
      %291 = vst.msk [vmem:[%s261 + $0x159] sm:$0xff] %vm205, %v201
      %292 = vst.msk [vmem:[%s261 + $0x169] sm:$0xff] %vm205, %v202
      %293 = vst.msk [vmem:[%s261 + $0x171] sm:$0xff] %vm205, %v203
      %v295 = vperm.slane %v204, 0
      %v297 = vadd.f32 %v295, 0.0
      %v298 = vld [vmem:[#allocation2] sm:$0xff]
      %v299 = vld [vmem:[#allocation2 + $0x8] sm:$0xff]
      %v300 = vld [vmem:[#allocation2 + $0x18] sm:$0xff]
      %v301 = vld [vmem:[#allocation2 + $0x20] sm:$0xff]
      %v302 = vld [vmem:[#allocation2 + $0x30] sm:$0xff]
      %v303 = vld [vmem:[#allocation2 + $0x38] sm:$0xff]
      %v304 = vld [vmem:[#allocation2 + $0x48] sm:$0xff]
      %v305 = vld [vmem:[#allocation2 + $0x50] sm:$0xff]
      %v306 = vld [vmem:[#allocation2 + $0x60] sm:$0xff]
      %v307 = vld [vmem:[#allocation2 + $0x68] sm:$0xff]
      %v308 = vld [vmem:[#allocation2 + $0x78] sm:$0xff]
      %v309 = vld [vmem:[#allocation2 + $0x80] sm:$0xff]
      %v310 = vld [vmem:[#allocation2 + $0x90] sm:$0xff]
      %v311 = vld [vmem:[#allocation2 + $0x98] sm:$0xff]
      %v312 = vld [vmem:[#allocation2 + $0xa8] sm:$0xff]
      %v313 = vld [vmem:[#allocation2 + $0xb0] sm:$0xff]
      %v314 = vld [vmem:[#allocation2 + $0xc0] sm:$0xff]
      %v315 = vld [vmem:[#allocation2 + $0xc8] sm:$0xff]
      %v316 = vld [vmem:[#allocation2 + $0xd8] sm:$0xff]
      %v317 = vld [vmem:[#allocation2 + $0xe0] sm:$0xff]
      %v318 = vld [vmem:[#allocation2 + $0xf0] sm:$0xff]
      %v319 = vld [vmem:[#allocation2 + $0xf8] sm:$0xff]
      %v320 = vld [vmem:[#allocation2 + $0x108] sm:$0xff]
      %v321 = vld [vmem:[#allocation2 + $0x110] sm:$0xff]
      %v322 = vld [vmem:[#allocation2 + $0x120] sm:$0xff]
      %v323 = vld [vmem:[#allocation2 + $0x128] sm:$0xff]
      %v324 = vld [vmem:[#allocation2 + $0x138] sm:$0xff]
      %v325 = vld [vmem:[#allocation2 + $0x140] sm:$0xff]
      %v326 = vld [vmem:[#allocation2 + $0x150] sm:$0xff]
      %v327 = vld [vmem:[#allocation2 + $0x158] sm:$0xff]
      %v328 = vld [vmem:[#allocation2 + $0x168] sm:$0xff]
      %v329 = vld [vmem:[#allocation2 + $0x170] sm:$0xff]
      %v330 = vpack.c.bf16 %v299, %v298
      %v331 = vpack.c.bf16 %v301, %v300
      %v332 = vpack.c.bf16 %v303, %v302
      %v333 = vpack.c.bf16 %v305, %v304
      %v334 = vpack.c.bf16 %v307, %v306
      %v335 = vpack.c.bf16 %v309, %v308
      %v336 = vpack.c.bf16 %v311, %v310
      %v337 = vpack.c.bf16 %v313, %v312
      %v338 = vpack.c.bf16 %v315, %v314
      %v339 = vpack.c.bf16 %v317, %v316
      %v340 = vpack.c.bf16 %v319, %v318
      %v341 = vpack.c.bf16 %v321, %v320
      %v342 = vpack.c.bf16 %v323, %v322
      %v343 = vpack.c.bf16 %v325, %v324
      %v344 = vpack.c.bf16 %v327, %v326
      %v345 = vpack.c.bf16 %v329, %v328
      %v346 = vld [vmem:[%s1] sm:$0x3]
      %v348 = vsel %vm205, %v330, 0
      %v351 = vsel %vm205, %v331, 0
      %v354 = vsel %vm205, %v332, 0
      %v357 = vsel %vm205, %v333, 0
      %v360 = vsel %vm205, %v334, 0
      %v363 = vsel %vm205, %v335, 0
      %v366 = vsel %vm205, %v336, 0
      %v369 = vsel %vm205, %v337, 0
      %v372 = vsel %vm205, %v338, 0
      %v375 = vsel %vm205, %v339, 0
      %v378 = vsel %vm205, %v340, 0
      %v381 = vsel %vm205, %v341, 0
      %v384 = vsel %vm205, %v342, 0
      %v387 = vsel %vm205, %v343, 0
      %v390 = vsel %vm205, %v344, 0
      %v393 = vsel %vm205, %v345, 0
      %vm395 = vcmask 1040384
      %vm396 = vcmask 1041408
      %v397 = vsel %vm395, 4294967295, 65535
      %v398 = vsel %vm396, %v397, 0
      %v400 = vand.u32 %v346, %v398
      %402 = vmatpush.bf16.msra.mxu0 0
      %403 = vmatpush.bf16.msra.mxu0 0
      %404 = vmatpush.bf16.msra.mxu0 0
      %405 = vmatpush.bf16.msra.mxu0 0
      %406 = vmatpush.bf16.msra.mxu0 0
      %407 = vmatpush.bf16.msra.mxu0 0
      %408 = vmatpush.bf16.msra.mxu0 0
      %409 = vmatpush.bf16.msra.mxu0 %v400
      %410 = vmatmul.bf16.gmra.mxu0 %v348
      %v411 = vpop.f32.mrf.mxu0
      %v412 = vadd.f32 0.0, %v411
      %v413 = vpop.f32.mrf.mxu0
      %v414 = vadd.f32 0.0, %v413
      %415 = vmatmul.bf16.gmra.mxu0 %v351
      %v416 = vpop.f32.mrf.mxu0
      %v417 = vadd.f32 0.0, %v416
      %v418 = vpop.f32.mrf.mxu0
      %v419 = vadd.f32 0.0, %v418
      %420 = vmatmul.bf16.gmra.mxu0 %v354
      %v421 = vpop.f32.mrf.mxu0
      %v422 = vadd.f32 0.0, %v421
      %v423 = vpop.f32.mrf.mxu0
      %v424 = vadd.f32 0.0, %v423
      %425 = vmatmul.bf16.gmra.mxu0 %v357
      %v426 = vpop.f32.mrf.mxu0
      %v427 = vadd.f32 0.0, %v426
      %v428 = vpop.f32.mrf.mxu0
      %v429 = vadd.f32 0.0, %v428
      %430 = vmatmul.bf16.gmra.mxu0 %v360
      %v431 = vpop.f32.mrf.mxu0
      %v432 = vadd.f32 0.0, %v431
      %v433 = vpop.f32.mrf.mxu0
      %v434 = vadd.f32 0.0, %v433
      %435 = vmatmul.bf16.gmra.mxu0 %v363
      %v436 = vpop.f32.mrf.mxu0
      %v437 = vadd.f32 0.0, %v436
      %v438 = vpop.f32.mrf.mxu0
      %v439 = vadd.f32 0.0, %v438
      %440 = vmatmul.bf16.gmra.mxu0 %v366
      %v441 = vpop.f32.mrf.mxu0
      %v442 = vadd.f32 0.0, %v441
      %v443 = vpop.f32.mrf.mxu0
      %v444 = vadd.f32 0.0, %v443
      %445 = vmatmul.bf16.gmra.mxu0 %v369
      %v446 = vpop.f32.mrf.mxu0
      %v447 = vadd.f32 0.0, %v446
      %v448 = vpop.f32.mrf.mxu0
      %v449 = vadd.f32 0.0, %v448
      %450 = vmatmul.bf16.gmra.mxu0 %v372
      %v451 = vpop.f32.mrf.mxu0
      %v452 = vadd.f32 0.0, %v451
      %v453 = vpop.f32.mrf.mxu0
      %v454 = vadd.f32 0.0, %v453
      %455 = vmatmul.bf16.gmra.mxu0 %v375
      %v456 = vpop.f32.mrf.mxu0
      %v457 = vadd.f32 0.0, %v456
      %v458 = vpop.f32.mrf.mxu0
      %v459 = vadd.f32 0.0, %v458
      %460 = vmatmul.bf16.gmra.mxu0 %v378
      %v461 = vpop.f32.mrf.mxu0
      %v462 = vadd.f32 0.0, %v461
      %v463 = vpop.f32.mrf.mxu0
      %v464 = vadd.f32 0.0, %v463
      %465 = vmatmul.bf16.gmra.mxu0 %v381
      %v466 = vpop.f32.mrf.mxu0
      %v467 = vadd.f32 0.0, %v466
      %v468 = vpop.f32.mrf.mxu0
      %v469 = vadd.f32 0.0, %v468
      %470 = vmatmul.bf16.gmra.mxu0 %v384
      %v471 = vpop.f32.mrf.mxu0
      %v472 = vadd.f32 0.0, %v471
      %v473 = vpop.f32.mrf.mxu0
      %v474 = vadd.f32 0.0, %v473
      %475 = vmatmul.bf16.gmra.mxu0 %v387
      %v476 = vpop.f32.mrf.mxu0
      %v477 = vadd.f32 0.0, %v476
      %v478 = vpop.f32.mrf.mxu0
      %v479 = vadd.f32 0.0, %v478
      %480 = vmatmul.bf16.gmra.mxu0 %v390
      %v481 = vpop.f32.mrf.mxu0
      %v482 = vadd.f32 0.0, %v481
      %v483 = vpop.f32.mrf.mxu0
      %v484 = vadd.f32 0.0, %v483
      %485 = vmatmul.bf16.gmra.mxu0 %v393
      %v486 = vpop.f32.mrf.mxu0
      %v487 = vadd.f32 0.0, %v486
      %v488 = vpop.f32.mrf.mxu0
      %v489 = vadd.f32 0.0, %v488
      %490 = vdwg.mxu0
      %v491 = vadd.f32 %v297, %v412
      %v492 = vadd.f32 %v297, %v414
      %v493 = vadd.f32 %v297, %v417
      %v494 = vadd.f32 %v297, %v419
      %v495 = vadd.f32 %v297, %v422
      %v496 = vadd.f32 %v297, %v424
      %v497 = vadd.f32 %v297, %v427
      %v498 = vadd.f32 %v297, %v429
      %v499 = vadd.f32 %v297, %v432
      %v500 = vadd.f32 %v297, %v434
      %v501 = vadd.f32 %v297, %v437
      %v502 = vadd.f32 %v297, %v439
      %v503 = vadd.f32 %v297, %v442
      %v504 = vadd.f32 %v297, %v444
      %v505 = vadd.f32 %v297, %v447
      %v506 = vadd.f32 %v297, %v449
      %v507 = vadd.f32 %v297, %v452
      %v508 = vadd.f32 %v297, %v454
      %v509 = vadd.f32 %v297, %v457
      %v510 = vadd.f32 %v297, %v459
      %v511 = vadd.f32 %v297, %v462
      %v512 = vadd.f32 %v297, %v464
      %v513 = vadd.f32 %v297, %v467
      %v514 = vadd.f32 %v297, %v469
      %v515 = vadd.f32 %v297, %v472
      %v516 = vadd.f32 %v297, %v474
      %v517 = vadd.f32 %v297, %v477
      %v518 = vadd.f32 %v297, %v479
      %v519 = vadd.f32 %v297, %v482
      %v520 = vadd.f32 %v297, %v484
      %v521 = vadd.f32 %v297, %v487
      %v522 = vadd.f32 %v297, %v489
      %v523 = vld [vmem:[#allocation2 + $0x1] sm:$0xff]
      %v524 = vld [vmem:[#allocation2 + $0x9] sm:$0xff]
      %v525 = vld [vmem:[#allocation2 + $0x19] sm:$0xff]
      %v526 = vld [vmem:[#allocation2 + $0x21] sm:$0xff]
      %v527 = vld [vmem:[#allocation2 + $0x31] sm:$0xff]
      %v528 = vld [vmem:[#allocation2 + $0x39] sm:$0xff]
      %v529 = vld [vmem:[#allocation2 + $0x49] sm:$0xff]
      %v530 = vld [vmem:[#allocation2 + $0x51] sm:$0xff]
      %v531 = vld [vmem:[#allocation2 + $0x61] sm:$0xff]
      %v532 = vld [vmem:[#allocation2 + $0x69] sm:$0xff]
      %v533 = vld [vmem:[#allocation2 + $0x79] sm:$0xff]
      %v534 = vld [vmem:[#allocation2 + $0x81] sm:$0xff]
      %v535 = vld [vmem:[#allocation2 + $0x91] sm:$0xff]
      %v536 = vld [vmem:[#allocation2 + $0x99] sm:$0xff]
      %v537 = vld [vmem:[#allocation2 + $0xa9] sm:$0xff]
      %v538 = vld [vmem:[#allocation2 + $0xb1] sm:$0xff]
      %v539 = vld [vmem:[#allocation2 + $0xc1] sm:$0xff]
      %v540 = vld [vmem:[#allocation2 + $0xc9] sm:$0xff]
      %v541 = vld [vmem:[#allocation2 + $0xd9] sm:$0xff]
      %v542 = vld [vmem:[#allocation2 + $0xe1] sm:$0xff]
      %v543 = vld [vmem:[#allocation2 + $0xf1] sm:$0xff]
      %v544 = vld [vmem:[#allocation2 + $0xf9] sm:$0xff]
      %v545 = vld [vmem:[#allocation2 + $0x109] sm:$0xff]
      %v546 = vld [vmem:[#allocation2 + $0x111] sm:$0xff]
      %v547 = vld [vmem:[#allocation2 + $0x121] sm:$0xff]
      %v548 = vld [vmem:[#allocation2 + $0x129] sm:$0xff]
      %v549 = vld [vmem:[#allocation2 + $0x139] sm:$0xff]
      %v550 = vld [vmem:[#allocation2 + $0x141] sm:$0xff]
      %v551 = vld [vmem:[#allocation2 + $0x151] sm:$0xff]
      %v552 = vld [vmem:[#allocation2 + $0x159] sm:$0xff]
      %v553 = vld [vmem:[#allocation2 + $0x169] sm:$0xff]
      %v554 = vld [vmem:[#allocation2 + $0x171] sm:$0xff]
      %v555 = vpack.c.bf16 %v524, %v523
      %v556 = vpack.c.bf16 %v526, %v525
      %v557 = vpack.c.bf16 %v528, %v527
      %v558 = vpack.c.bf16 %v530, %v529
      %v559 = vpack.c.bf16 %v532, %v531
      %v560 = vpack.c.bf16 %v534, %v533
      %v561 = vpack.c.bf16 %v536, %v535
      %v562 = vpack.c.bf16 %v538, %v537
      %v563 = vpack.c.bf16 %v540, %v539
      %v564 = vpack.c.bf16 %v542, %v541
      %v565 = vpack.c.bf16 %v544, %v543
      %v566 = vpack.c.bf16 %v546, %v545
      %v567 = vpack.c.bf16 %v548, %v547
      %v568 = vpack.c.bf16 %v550, %v549
      %v569 = vpack.c.bf16 %v552, %v551
      %v570 = vpack.c.bf16 %v554, %v553
      %s571 = scalar_lea.vmem %s1, 2
      %v572 = vld [vmem:[%s571] sm:$0x3]
      %v574 = vsel %vm205, %v555, 0
      %v577 = vsel %vm205, %v556, 0
      %v580 = vsel %vm205, %v557, 0
      %v583 = vsel %vm205, %v558, 0
      %v586 = vsel %vm205, %v559, 0
      %v589 = vsel %vm205, %v560, 0
      %v592 = vsel %vm205, %v561, 0
      %v595 = vsel %vm205, %v562, 0
      %v598 = vsel %vm205, %v563, 0
      %v601 = vsel %vm205, %v564, 0
      %v604 = vsel %vm205, %v565, 0
      %v607 = vsel %vm205, %v566, 0
      %v610 = vsel %vm205, %v567, 0
      %v613 = vsel %vm205, %v568, 0
      %v616 = vsel %vm205, %v569, 0
      %v619 = vsel %vm205, %v570, 0
      %v622 = vand.u32 %v572, %v398
      %624 = vmatpush.bf16.msra.mxu0 0
      %625 = vmatpush.bf16.msra.mxu0 0
      %626 = vmatpush.bf16.msra.mxu0 0
      %627 = vmatpush.bf16.msra.mxu0 0
      %628 = vmatpush.bf16.msra.mxu0 0
      %629 = vmatpush.bf16.msra.mxu0 0
      %630 = vmatpush.bf16.msra.mxu0 0
      %631 = vmatpush.bf16.msra.mxu0 %v622
      %632 = vmatmul.bf16.gmra.mxu0 %v574
      %v633 = vpop.f32.mrf.mxu0
      %v634 = vadd.f32 0.0, %v633
      %v635 = vpop.f32.mrf.mxu0
      %v636 = vadd.f32 0.0, %v635
      %637 = vmatmul.bf16.gmra.mxu0 %v577
      %v638 = vpop.f32.mrf.mxu0
      %v639 = vadd.f32 0.0, %v638
      %v640 = vpop.f32.mrf.mxu0
      %v641 = vadd.f32 0.0, %v640
      %642 = vmatmul.bf16.gmra.mxu0 %v580
      %v643 = vpop.f32.mrf.mxu0
      %v644 = vadd.f32 0.0, %v643
      %v645 = vpop.f32.mrf.mxu0
      %v646 = vadd.f32 0.0, %v645
      %647 = vmatmul.bf16.gmra.mxu0 %v583
      %v648 = vpop.f32.mrf.mxu0
      %v649 = vadd.f32 0.0, %v648
      %v650 = vpop.f32.mrf.mxu0
      %v651 = vadd.f32 0.0, %v650
      %652 = vmatmul.bf16.gmra.mxu0 %v586
      %v653 = vpop.f32.mrf.mxu0
      %v654 = vadd.f32 0.0, %v653
      %v655 = vpop.f32.mrf.mxu0
      %v656 = vadd.f32 0.0, %v655
      %657 = vmatmul.bf16.gmra.mxu0 %v589
      %v658 = vpop.f32.mrf.mxu0
      %v659 = vadd.f32 0.0, %v658
      %v660 = vpop.f32.mrf.mxu0
      %v661 = vadd.f32 0.0, %v660
      %662 = vmatmul.bf16.gmra.mxu0 %v592
      %v663 = vpop.f32.mrf.mxu0
      %v664 = vadd.f32 0.0, %v663
      %v665 = vpop.f32.mrf.mxu0
      %v666 = vadd.f32 0.0, %v665
      %667 = vmatmul.bf16.gmra.mxu0 %v595
      %v668 = vpop.f32.mrf.mxu0
      %v669 = vadd.f32 0.0, %v668
      %v670 = vpop.f32.mrf.mxu0
      %v671 = vadd.f32 0.0, %v670
      %672 = vmatmul.bf16.gmra.mxu0 %v598
      %v673 = vpop.f32.mrf.mxu0
      %v674 = vadd.f32 0.0, %v673
      %v675 = vpop.f32.mrf.mxu0
      %v676 = vadd.f32 0.0, %v675
      %677 = vmatmul.bf16.gmra.mxu0 %v601
      %v678 = vpop.f32.mrf.mxu0
      %v679 = vadd.f32 0.0, %v678
      %v680 = vpop.f32.mrf.mxu0
      %v681 = vadd.f32 0.0, %v680
      %682 = vmatmul.bf16.gmra.mxu0 %v604
      %v683 = vpop.f32.mrf.mxu0
      %v684 = vadd.f32 0.0, %v683
      %v685 = vpop.f32.mrf.mxu0
      %v686 = vadd.f32 0.0, %v685
      %687 = vmatmul.bf16.gmra.mxu0 %v607
      %v688 = vpop.f32.mrf.mxu0
      %v689 = vadd.f32 0.0, %v688
      %v690 = vpop.f32.mrf.mxu0
      %v691 = vadd.f32 0.0, %v690
      %692 = vmatmul.bf16.gmra.mxu0 %v610
      %v693 = vpop.f32.mrf.mxu0
      %v694 = vadd.f32 0.0, %v693
      %v695 = vpop.f32.mrf.mxu0
      %v696 = vadd.f32 0.0, %v695
      %697 = vmatmul.bf16.gmra.mxu0 %v613
      %v698 = vpop.f32.mrf.mxu0
      %v699 = vadd.f32 0.0, %v698
      %v700 = vpop.f32.mrf.mxu0
      %v701 = vadd.f32 0.0, %v700
      %702 = vmatmul.bf16.gmra.mxu0 %v616
      %v703 = vpop.f32.mrf.mxu0
      %v704 = vadd.f32 0.0, %v703
      %v705 = vpop.f32.mrf.mxu0
      %v706 = vadd.f32 0.0, %v705
      %707 = vmatmul.bf16.gmra.mxu0 %v619
      %v708 = vpop.f32.mrf.mxu0
      %v709 = vadd.f32 0.0, %v708
      %v710 = vpop.f32.mrf.mxu0
      %v711 = vadd.f32 0.0, %v710
      %712 = vdwg.mxu0
      %v713 = vadd.f32 %v491, %v634
      %v714 = vadd.f32 %v492, %v636
      %v715 = vadd.f32 %v493, %v639
      %v716 = vadd.f32 %v494, %v641
      %v717 = vadd.f32 %v495, %v644
      %v718 = vadd.f32 %v496, %v646
      %v719 = vadd.f32 %v497, %v649
      %v720 = vadd.f32 %v498, %v651
      %v721 = vadd.f32 %v499, %v654
      %v722 = vadd.f32 %v500, %v656
      %v723 = vadd.f32 %v501, %v659
      %v724 = vadd.f32 %v502, %v661
      %v725 = vadd.f32 %v503, %v664
      %v726 = vadd.f32 %v504, %v666
      %v727 = vadd.f32 %v505, %v669
      %v728 = vadd.f32 %v506, %v671
      %v729 = vadd.f32 %v507, %v674
      %v730 = vadd.f32 %v508, %v676
      %v731 = vadd.f32 %v509, %v679
      %v732 = vadd.f32 %v510, %v681
      %v733 = vadd.f32 %v511, %v684
      %v734 = vadd.f32 %v512, %v686
      %v735 = vadd.f32 %v513, %v689
      %v736 = vadd.f32 %v514, %v691
      %v737 = vadd.f32 %v515, %v694
      %v738 = vadd.f32 %v516, %v696
      %v739 = vadd.f32 %v517, %v699
      %v740 = vadd.f32 %v518, %v701
      %v741 = vadd.f32 %v519, %v704
      %v742 = vadd.f32 %v520, %v706
      %v743 = vadd.f32 %v521, %v709
      %v744 = vadd.f32 %v522, %v711
      %v745 = vld [vmem:[#allocation2 + $0x2] sm:$0xff]
      %v746 = vld [vmem:[#allocation2 + $0xa] sm:$0xff]
      %v747 = vld [vmem:[#allocation2 + $0x1a] sm:$0xff]
      %v748 = vld [vmem:[#allocation2 + $0x22] sm:$0xff]
      %v749 = vld [vmem:[#allocation2 + $0x32] sm:$0xff]
      %v750 = vld [vmem:[#allocation2 + $0x3a] sm:$0xff]
      %v751 = vld [vmem:[#allocation2 + $0x4a] sm:$0xff]
      %v752 = vld [vmem:[#allocation2 + $0x52] sm:$0xff]
      %v753 = vld [vmem:[#allocation2 + $0x62] sm:$0xff]
      %v754 = vld [vmem:[#allocation2 + $0x6a] sm:$0xff]
      %v755 = vld [vmem:[#allocation2 + $0x7a] sm:$0xff]
      %v756 = vld [vmem:[#allocation2 + $0x82] sm:$0xff]
      %v757 = vld [vmem:[#allocation2 + $0x92] sm:$0xff]
      %v758 = vld [vmem:[#allocation2 + $0x9a] sm:$0xff]
      %v759 = vld [vmem:[#allocation2 + $0xaa] sm:$0xff]
      %v760 = vld [vmem:[#allocation2 + $0xb2] sm:$0xff]
      %v761 = vld [vmem:[#allocation2 + $0xc2] sm:$0xff]
      %v762 = vld [vmem:[#allocation2 + $0xca] sm:$0xff]
      %v763 = vld [vmem:[#allocation2 + $0xda] sm:$0xff]
      %v764 = vld [vmem:[#allocation2 + $0xe2] sm:$0xff]
      %v765 = vld [vmem:[#allocation2 + $0xf2] sm:$0xff]
      %v766 = vld [vmem:[#allocation2 + $0xfa] sm:$0xff]
      %v767 = vld [vmem:[#allocation2 + $0x10a] sm:$0xff]
      %v768 = vld [vmem:[#allocation2 + $0x112] sm:$0xff]
      %v769 = vld [vmem:[#allocation2 + $0x122] sm:$0xff]
      %v770 = vld [vmem:[#allocation2 + $0x12a] sm:$0xff]
      %v771 = vld [vmem:[#allocation2 + $0x13a] sm:$0xff]
      %v772 = vld [vmem:[#allocation2 + $0x142] sm:$0xff]
      %v773 = vld [vmem:[#allocation2 + $0x152] sm:$0xff]
      %v774 = vld [vmem:[#allocation2 + $0x15a] sm:$0xff]
      %v775 = vld [vmem:[#allocation2 + $0x16a] sm:$0xff]
      %v776 = vld [vmem:[#allocation2 + $0x172] sm:$0xff]
      %v777 = vpack.c.bf16 %v746, %v745
      %v778 = vpack.c.bf16 %v748, %v747
      %v779 = vpack.c.bf16 %v750, %v749
      %v780 = vpack.c.bf16 %v752, %v751
      %v781 = vpack.c.bf16 %v754, %v753
      %v782 = vpack.c.bf16 %v756, %v755
      %v783 = vpack.c.bf16 %v758, %v757
      %v784 = vpack.c.bf16 %v760, %v759
      %v785 = vpack.c.bf16 %v762, %v761
      %v786 = vpack.c.bf16 %v764, %v763
      %v787 = vpack.c.bf16 %v766, %v765
      %v788 = vpack.c.bf16 %v768, %v767
      %v789 = vpack.c.bf16 %v770, %v769
      %v790 = vpack.c.bf16 %v772, %v771
      %v791 = vpack.c.bf16 %v774, %v773
      %v792 = vpack.c.bf16 %v776, %v775
      %s793 = scalar_lea.vmem %s1, 4
      %v794 = vld [vmem:[%s793] sm:$0x3]
      %v796 = vsel %vm205, %v777, 0
      %v799 = vsel %vm205, %v778, 0
      %v802 = vsel %vm205, %v779, 0
      %v805 = vsel %vm205, %v780, 0
      %v808 = vsel %vm205, %v781, 0
      %v811 = vsel %vm205, %v782, 0
      %v814 = vsel %vm205, %v783, 0
      %v817 = vsel %vm205, %v784, 0
      %v820 = vsel %vm205, %v785, 0
      %v823 = vsel %vm205, %v786, 0
      %v826 = vsel %vm205, %v787, 0
      %v829 = vsel %vm205, %v788, 0
      %v832 = vsel %vm205, %v789, 0
      %v835 = vsel %vm205, %v790, 0
      %v838 = vsel %vm205, %v791, 0
      %v841 = vsel %vm205, %v792, 0
      %v844 = vand.u32 %v794, %v398
      %846 = vmatpush.bf16.msra.mxu0 0
      %847 = vmatpush.bf16.msra.mxu0 0
      %848 = vmatpush.bf16.msra.mxu0 0
      %849 = vmatpush.bf16.msra.mxu0 0
      %850 = vmatpush.bf16.msra.mxu0 0
      %851 = vmatpush.bf16.msra.mxu0 0
      %852 = vmatpush.bf16.msra.mxu0 0
      %853 = vmatpush.bf16.msra.mxu0 %v844
      %854 = vmatmul.bf16.gmra.mxu0 %v796
      %v855 = vpop.f32.mrf.mxu0
      %v856 = vadd.f32 0.0, %v855
      %v857 = vpop.f32.mrf.mxu0
      %v858 = vadd.f32 0.0, %v857
      %859 = vmatmul.bf16.gmra.mxu0 %v799
      %v860 = vpop.f32.mrf.mxu0
      %v861 = vadd.f32 0.0, %v860
      %v862 = vpop.f32.mrf.mxu0
      %v863 = vadd.f32 0.0, %v862
      %864 = vmatmul.bf16.gmra.mxu0 %v802
      %v865 = vpop.f32.mrf.mxu0
      %v866 = vadd.f32 0.0, %v865
      %v867 = vpop.f32.mrf.mxu0
      %v868 = vadd.f32 0.0, %v867
      %869 = vmatmul.bf16.gmra.mxu0 %v805
      %v870 = vpop.f32.mrf.mxu0
      %v871 = vadd.f32 0.0, %v870
      %v872 = vpop.f32.mrf.mxu0
      %v873 = vadd.f32 0.0, %v872
      %874 = vmatmul.bf16.gmra.mxu0 %v808
      %v875 = vpop.f32.mrf.mxu0
      %v876 = vadd.f32 0.0, %v875
      %v877 = vpop.f32.mrf.mxu0
      %v878 = vadd.f32 0.0, %v877
      %879 = vmatmul.bf16.gmra.mxu0 %v811
      %v880 = vpop.f32.mrf.mxu0
      %v881 = vadd.f32 0.0, %v880
      %v882 = vpop.f32.mrf.mxu0
      %v883 = vadd.f32 0.0, %v882
      %884 = vmatmul.bf16.gmra.mxu0 %v814
      %v885 = vpop.f32.mrf.mxu0
      %v886 = vadd.f32 0.0, %v885
      %v887 = vpop.f32.mrf.mxu0
      %v888 = vadd.f32 0.0, %v887
      %889 = vmatmul.bf16.gmra.mxu0 %v817
      %v890 = vpop.f32.mrf.mxu0
      %v891 = vadd.f32 0.0, %v890
      %v892 = vpop.f32.mrf.mxu0
      %v893 = vadd.f32 0.0, %v892
      %894 = vmatmul.bf16.gmra.mxu0 %v820
      %v895 = vpop.f32.mrf.mxu0
      %v896 = vadd.f32 0.0, %v895
      %v897 = vpop.f32.mrf.mxu0
      %v898 = vadd.f32 0.0, %v897
      %899 = vmatmul.bf16.gmra.mxu0 %v823
      %v900 = vpop.f32.mrf.mxu0
      %v901 = vadd.f32 0.0, %v900
      %v902 = vpop.f32.mrf.mxu0
      %v903 = vadd.f32 0.0, %v902
      %904 = vmatmul.bf16.gmra.mxu0 %v826
      %v905 = vpop.f32.mrf.mxu0
      %v906 = vadd.f32 0.0, %v905
      %v907 = vpop.f32.mrf.mxu0
      %v908 = vadd.f32 0.0, %v907
      %909 = vmatmul.bf16.gmra.mxu0 %v829
      %v910 = vpop.f32.mrf.mxu0
      %v911 = vadd.f32 0.0, %v910
      %v912 = vpop.f32.mrf.mxu0
      %v913 = vadd.f32 0.0, %v912
      %914 = vmatmul.bf16.gmra.mxu0 %v832
      %v915 = vpop.f32.mrf.mxu0
      %v916 = vadd.f32 0.0, %v915
      %v917 = vpop.f32.mrf.mxu0
      %v918 = vadd.f32 0.0, %v917
      %919 = vmatmul.bf16.gmra.mxu0 %v835
      %v920 = vpop.f32.mrf.mxu0
      %v921 = vadd.f32 0.0, %v920
      %v922 = vpop.f32.mrf.mxu0
      %v923 = vadd.f32 0.0, %v922
      %924 = vmatmul.bf16.gmra.mxu0 %v838
      %v925 = vpop.f32.mrf.mxu0
      %v926 = vadd.f32 0.0, %v925
      %v927 = vpop.f32.mrf.mxu0
      %v928 = vadd.f32 0.0, %v927
      %929 = vmatmul.bf16.gmra.mxu0 %v841
      %v930 = vpop.f32.mrf.mxu0
      %v931 = vadd.f32 0.0, %v930
      %v932 = vpop.f32.mrf.mxu0
      %v933 = vadd.f32 0.0, %v932
      %934 = vdwg.mxu0
      %v935 = vadd.f32 %v713, %v856
      %v936 = vadd.f32 %v714, %v858
      %v937 = vadd.f32 %v715, %v861
      %v938 = vadd.f32 %v716, %v863
      %v939 = vadd.f32 %v717, %v866
      %v940 = vadd.f32 %v718, %v868
      %v941 = vadd.f32 %v719, %v871
      %v942 = vadd.f32 %v720, %v873
      %v943 = vadd.f32 %v721, %v876
      %v944 = vadd.f32 %v722, %v878
      %v945 = vadd.f32 %v723, %v881
      %v946 = vadd.f32 %v724, %v883
      %v947 = vadd.f32 %v725, %v886
      %v948 = vadd.f32 %v726, %v888
      %v949 = vadd.f32 %v727, %v891
      %v950 = vadd.f32 %v728, %v893
      %v951 = vadd.f32 %v729, %v896
      %v952 = vadd.f32 %v730, %v898
      %v953 = vadd.f32 %v731, %v901
      %v954 = vadd.f32 %v732, %v903
      %v955 = vadd.f32 %v733, %v906
      %v956 = vadd.f32 %v734, %v908
      %v957 = vadd.f32 %v735, %v911
      %v958 = vadd.f32 %v736, %v913
      %v959 = vadd.f32 %v737, %v916
      %v960 = vadd.f32 %v738, %v918
      %v961 = vadd.f32 %v739, %v921
      %v962 = vadd.f32 %v740, %v923
      %v963 = vadd.f32 %v741, %v926
      %v964 = vadd.f32 %v742, %v928
      %v965 = vadd.f32 %v743, %v931
      %v966 = vadd.f32 %v744, %v933
      %v967 = vld [vmem:[%s261] sm:$0xff]
      %v968 = vld [vmem:[%s261 + $0x8] sm:$0xff]
      %v969 = vld [vmem:[%s261 + $0x18] sm:$0xff]
      %v970 = vld [vmem:[%s261 + $0x20] sm:$0xff]
      %v971 = vld [vmem:[%s261 + $0x30] sm:$0xff]
      %v972 = vld [vmem:[%s261 + $0x38] sm:$0xff]
      %v973 = vld [vmem:[%s261 + $0x48] sm:$0xff]
      %v974 = vld [vmem:[%s261 + $0x50] sm:$0xff]
      %v975 = vld [vmem:[%s261 + $0x60] sm:$0xff]
      %v976 = vld [vmem:[%s261 + $0x68] sm:$0xff]
      %v977 = vld [vmem:[%s261 + $0x78] sm:$0xff]
      %v978 = vld [vmem:[%s261 + $0x80] sm:$0xff]
      %v979 = vld [vmem:[%s261 + $0x90] sm:$0xff]
      %v980 = vld [vmem:[%s261 + $0x98] sm:$0xff]
      %v981 = vld [vmem:[%s261 + $0xa8] sm:$0xff]
      %v982 = vld [vmem:[%s261 + $0xb0] sm:$0xff]
      %v983 = vld [vmem:[%s261 + $0xc0] sm:$0xff]
      %v984 = vld [vmem:[%s261 + $0xc8] sm:$0xff]
      %v985 = vld [vmem:[%s261 + $0xd8] sm:$0xff]
      %v986 = vld [vmem:[%s261 + $0xe0] sm:$0xff]
      %v987 = vld [vmem:[%s261 + $0xf0] sm:$0xff]
      %v988 = vld [vmem:[%s261 + $0xf8] sm:$0xff]
      %v989 = vld [vmem:[%s261 + $0x108] sm:$0xff]
      %v990 = vld [vmem:[%s261 + $0x110] sm:$0xff]
      %v991 = vld [vmem:[%s261 + $0x120] sm:$0xff]
      %v992 = vld [vmem:[%s261 + $0x128] sm:$0xff]
      %v993 = vld [vmem:[%s261 + $0x138] sm:$0xff]
      %v994 = vld [vmem:[%s261 + $0x140] sm:$0xff]
      %v995 = vld [vmem:[%s261 + $0x150] sm:$0xff]
      %v996 = vld [vmem:[%s261 + $0x158] sm:$0xff]
      %v997 = vld [vmem:[%s261 + $0x168] sm:$0xff]
      %v998 = vld [vmem:[%s261 + $0x170] sm:$0xff]
      %v999 = vpack.c.bf16 %v968, %v967
      %v1000 = vpack.c.bf16 %v970, %v969
      %v1001 = vpack.c.bf16 %v972, %v971
      %v1002 = vpack.c.bf16 %v974, %v973
      %v1003 = vpack.c.bf16 %v976, %v975
      %v1004 = vpack.c.bf16 %v978, %v977
      %v1005 = vpack.c.bf16 %v980, %v979
      %v1006 = vpack.c.bf16 %v982, %v981
      %v1007 = vpack.c.bf16 %v984, %v983
      %v1008 = vpack.c.bf16 %v986, %v985
      %v1009 = vpack.c.bf16 %v988, %v987
      %v1010 = vpack.c.bf16 %v990, %v989
      %v1011 = vpack.c.bf16 %v992, %v991
      %v1012 = vpack.c.bf16 %v994, %v993
      %v1013 = vpack.c.bf16 %v996, %v995
      %v1014 = vpack.c.bf16 %v998, %v997
      %s1015 = scalar_lea.vmem %s1, 6
      %v1016 = vld [vmem:[%s1015] sm:$0x3]
      %v1018 = vsel %vm205, %v999, 0
      %v1021 = vsel %vm205, %v1000, 0
      %v1024 = vsel %vm205, %v1001, 0
      %v1027 = vsel %vm205, %v1002, 0
      %v1030 = vsel %vm205, %v1003, 0
      %v1033 = vsel %vm205, %v1004, 0
      %v1036 = vsel %vm205, %v1005, 0
      %v1039 = vsel %vm205, %v1006, 0
      %v1042 = vsel %vm205, %v1007, 0
      %v1045 = vsel %vm205, %v1008, 0
      %v1048 = vsel %vm205, %v1009, 0
      %v1051 = vsel %vm205, %v1010, 0
      %v1054 = vsel %vm205, %v1011, 0
      %v1057 = vsel %vm205, %v1012, 0
      %v1060 = vsel %vm205, %v1013, 0
      %v1063 = vsel %vm205, %v1014, 0
      %v1066 = vand.u32 %v1016, %v398
      %1068 = vmatpush.bf16.msra.mxu0 0
      %1069 = vmatpush.bf16.msra.mxu0 0
      %1070 = vmatpush.bf16.msra.mxu0 0
      %1071 = vmatpush.bf16.msra.mxu0 0
      %1072 = vmatpush.bf16.msra.mxu0 0
      %1073 = vmatpush.bf16.msra.mxu0 0
      %1074 = vmatpush.bf16.msra.mxu0 0
      %1075 = vmatpush.bf16.msra.mxu0 %v1066
      %1076 = vmatmul.bf16.gmra.mxu0 %v1018
      %v1077 = vpop.f32.mrf.mxu0
      %v1078 = vadd.f32 0.0, %v1077
      %v1079 = vpop.f32.mrf.mxu0
      %v1080 = vadd.f32 0.0, %v1079
      %1081 = vmatmul.bf16.gmra.mxu0 %v1021
      %v1082 = vpop.f32.mrf.mxu0
      %v1083 = vadd.f32 0.0, %v1082
      %v1084 = vpop.f32.mrf.mxu0
      %v1085 = vadd.f32 0.0, %v1084
      %1086 = vmatmul.bf16.gmra.mxu0 %v1024
      %v1087 = vpop.f32.mrf.mxu0
      %v1088 = vadd.f32 0.0, %v1087
      %v1089 = vpop.f32.mrf.mxu0
      %v1090 = vadd.f32 0.0, %v1089
      %1091 = vmatmul.bf16.gmra.mxu0 %v1027
      %v1092 = vpop.f32.mrf.mxu0
      %v1093 = vadd.f32 0.0, %v1092
      %v1094 = vpop.f32.mrf.mxu0
      %v1095 = vadd.f32 0.0, %v1094
      %1096 = vmatmul.bf16.gmra.mxu0 %v1030
      %v1097 = vpop.f32.mrf.mxu0
      %v1098 = vadd.f32 0.0, %v1097
      %v1099 = vpop.f32.mrf.mxu0
      %v1100 = vadd.f32 0.0, %v1099
      %1101 = vmatmul.bf16.gmra.mxu0 %v1033
      %v1102 = vpop.f32.mrf.mxu0
      %v1103 = vadd.f32 0.0, %v1102
      %v1104 = vpop.f32.mrf.mxu0
      %v1105 = vadd.f32 0.0, %v1104
      %1106 = vmatmul.bf16.gmra.mxu0 %v1036
      %v1107 = vpop.f32.mrf.mxu0
      %v1108 = vadd.f32 0.0, %v1107
      %v1109 = vpop.f32.mrf.mxu0
      %v1110 = vadd.f32 0.0, %v1109
      %1111 = vmatmul.bf16.gmra.mxu0 %v1039
      %v1112 = vpop.f32.mrf.mxu0
      %v1113 = vadd.f32 0.0, %v1112
      %v1114 = vpop.f32.mrf.mxu0
      %v1115 = vadd.f32 0.0, %v1114
      %1116 = vmatmul.bf16.gmra.mxu0 %v1042
      %v1117 = vpop.f32.mrf.mxu0
      %v1118 = vadd.f32 0.0, %v1117
      %v1119 = vpop.f32.mrf.mxu0
      %v1120 = vadd.f32 0.0, %v1119
      %1121 = vmatmul.bf16.gmra.mxu0 %v1045
      %v1122 = vpop.f32.mrf.mxu0
      %v1123 = vadd.f32 0.0, %v1122
      %v1124 = vpop.f32.mrf.mxu0
      %v1125 = vadd.f32 0.0, %v1124
      %1126 = vmatmul.bf16.gmra.mxu0 %v1048
      %v1127 = vpop.f32.mrf.mxu0
      %v1128 = vadd.f32 0.0, %v1127
      %v1129 = vpop.f32.mrf.mxu0
      %v1130 = vadd.f32 0.0, %v1129
      %1131 = vmatmul.bf16.gmra.mxu0 %v1051
      %v1132 = vpop.f32.mrf.mxu0
      %v1133 = vadd.f32 0.0, %v1132
      %v1134 = vpop.f32.mrf.mxu0
      %v1135 = vadd.f32 0.0, %v1134
      %1136 = vmatmul.bf16.gmra.mxu0 %v1054
      %v1137 = vpop.f32.mrf.mxu0
      %v1138 = vadd.f32 0.0, %v1137
      %v1139 = vpop.f32.mrf.mxu0
      %v1140 = vadd.f32 0.0, %v1139
      %1141 = vmatmul.bf16.gmra.mxu0 %v1057
      %v1142 = vpop.f32.mrf.mxu0
      %v1143 = vadd.f32 0.0, %v1142
      %v1144 = vpop.f32.mrf.mxu0
      %v1145 = vadd.f32 0.0, %v1144
      %1146 = vmatmul.bf16.gmra.mxu0 %v1060
      %v1147 = vpop.f32.mrf.mxu0
      %v1148 = vadd.f32 0.0, %v1147
      %v1149 = vpop.f32.mrf.mxu0
      %v1150 = vadd.f32 0.0, %v1149
      %1151 = vmatmul.bf16.gmra.mxu0 %v1063
      %v1152 = vpop.f32.mrf.mxu0
      %v1153 = vadd.f32 0.0, %v1152
      %v1154 = vpop.f32.mrf.mxu0
      %v1155 = vadd.f32 0.0, %v1154
      %1156 = vdwg.mxu0
      %v1157 = vadd.f32 %v935, %v1078
      %v1158 = vadd.f32 %v936, %v1080
      %v1159 = vadd.f32 %v937, %v1083
      %v1160 = vadd.f32 %v938, %v1085
      %v1161 = vadd.f32 %v939, %v1088
      %v1162 = vadd.f32 %v940, %v1090
      %v1163 = vadd.f32 %v941, %v1093
      %v1164 = vadd.f32 %v942, %v1095
      %v1165 = vadd.f32 %v943, %v1098
      %v1166 = vadd.f32 %v944, %v1100
      %v1167 = vadd.f32 %v945, %v1103
      %v1168 = vadd.f32 %v946, %v1105
      %v1169 = vadd.f32 %v947, %v1108
      %v1170 = vadd.f32 %v948, %v1110
      %v1171 = vadd.f32 %v949, %v1113
      %v1172 = vadd.f32 %v950, %v1115
      %v1173 = vadd.f32 %v951, %v1118
      %v1174 = vadd.f32 %v952, %v1120
      %v1175 = vadd.f32 %v953, %v1123
      %v1176 = vadd.f32 %v954, %v1125
      %v1177 = vadd.f32 %v955, %v1128
      %v1178 = vadd.f32 %v956, %v1130
      %v1179 = vadd.f32 %v957, %v1133
      %v1180 = vadd.f32 %v958, %v1135
      %v1181 = vadd.f32 %v959, %v1138
      %v1182 = vadd.f32 %v960, %v1140
      %v1183 = vadd.f32 %v961, %v1143
      %v1184 = vadd.f32 %v962, %v1145
      %v1185 = vadd.f32 %v963, %v1148
      %v1186 = vadd.f32 %v964, %v1150
      %v1187 = vadd.f32 %v965, %v1153
      %v1188 = vadd.f32 %v966, %v1155
      %v1189 = vld [vmem:[%s261 + $0x1] sm:$0xff]
      %v1190 = vld [vmem:[%s261 + $0x9] sm:$0xff]
      %v1191 = vld [vmem:[%s261 + $0x19] sm:$0xff]
      %v1192 = vld [vmem:[%s261 + $0x21] sm:$0xff]
      %v1193 = vld [vmem:[%s261 + $0x31] sm:$0xff]
      %v1194 = vld [vmem:[%s261 + $0x39] sm:$0xff]
      %v1195 = vld [vmem:[%s261 + $0x49] sm:$0xff]
      %v1196 = vld [vmem:[%s261 + $0x51] sm:$0xff]
      %v1197 = vld [vmem:[%s261 + $0x61] sm:$0xff]
      %v1198 = vld [vmem:[%s261 + $0x69] sm:$0xff]
      %v1199 = vld [vmem:[%s261 + $0x79] sm:$0xff]
      %v1200 = vld [vmem:[%s261 + $0x81] sm:$0xff]
      %v1201 = vld [vmem:[%s261 + $0x91] sm:$0xff]
      %v1202 = vld [vmem:[%s261 + $0x99] sm:$0xff]
      %v1203 = vld [vmem:[%s261 + $0xa9] sm:$0xff]
      %v1204 = vld [vmem:[%s261 + $0xb1] sm:$0xff]
      %v1205 = vld [vmem:[%s261 + $0xc1] sm:$0xff]
      %v1206 = vld [vmem:[%s261 + $0xc9] sm:$0xff]
      %v1207 = vld [vmem:[%s261 + $0xd9] sm:$0xff]
      %v1208 = vld [vmem:[%s261 + $0xe1] sm:$0xff]
      %v1209 = vld [vmem:[%s261 + $0xf1] sm:$0xff]
      %v1210 = vld [vmem:[%s261 + $0xf9] sm:$0xff]
      %v1211 = vld [vmem:[%s261 + $0x109] sm:$0xff]
      %v1212 = vld [vmem:[%s261 + $0x111] sm:$0xff]
      %v1213 = vld [vmem:[%s261 + $0x121] sm:$0xff]
      %v1214 = vld [vmem:[%s261 + $0x129] sm:$0xff]
      %v1215 = vld [vmem:[%s261 + $0x139] sm:$0xff]
      %v1216 = vld [vmem:[%s261 + $0x141] sm:$0xff]
      %v1217 = vld [vmem:[%s261 + $0x151] sm:$0xff]
      %v1218 = vld [vmem:[%s261 + $0x159] sm:$0xff]
      %v1219 = vld [vmem:[%s261 + $0x169] sm:$0xff]
      %v1220 = vld [vmem:[%s261 + $0x171] sm:$0xff]
      %v1221 = vpack.c.bf16 %v1190, %v1189
      %v1222 = vpack.c.bf16 %v1192, %v1191
      %v1223 = vpack.c.bf16 %v1194, %v1193
      %v1224 = vpack.c.bf16 %v1196, %v1195
      %v1225 = vpack.c.bf16 %v1198, %v1197
      %v1226 = vpack.c.bf16 %v1200, %v1199
      %v1227 = vpack.c.bf16 %v1202, %v1201
      %v1228 = vpack.c.bf16 %v1204, %v1203
      %v1229 = vpack.c.bf16 %v1206, %v1205
      %v1230 = vpack.c.bf16 %v1208, %v1207
      %v1231 = vpack.c.bf16 %v1210, %v1209
      %v1232 = vpack.c.bf16 %v1212, %v1211
      %v1233 = vpack.c.bf16 %v1214, %v1213
      %v1234 = vpack.c.bf16 %v1216, %v1215
      %v1235 = vpack.c.bf16 %v1218, %v1217
      %v1236 = vpack.c.bf16 %v1220, %v1219
      %s1237 = scalar_lea.vmem %s1, 8
      %v1238 = vld [vmem:[%s1237] sm:$0x3]
      %v1240 = vsel %vm205, %v1221, 0
      %v1243 = vsel %vm205, %v1222, 0
      %v1246 = vsel %vm205, %v1223, 0
      %v1249 = vsel %vm205, %v1224, 0
      %v1252 = vsel %vm205, %v1225, 0
      %v1255 = vsel %vm205, %v1226, 0
      %v1258 = vsel %vm205, %v1227, 0
      %v1261 = vsel %vm205, %v1228, 0
      %v1264 = vsel %vm205, %v1229, 0
      %v1267 = vsel %vm205, %v1230, 0
      %v1270 = vsel %vm205, %v1231, 0
      %v1273 = vsel %vm205, %v1232, 0
      %v1276 = vsel %vm205, %v1233, 0
      %v1279 = vsel %vm205, %v1234, 0
      %v1282 = vsel %vm205, %v1235, 0
      %v1285 = vsel %vm205, %v1236, 0
      %v1288 = vand.u32 %v1238, %v398
      %1290 = vmatpush.bf16.msra.mxu0 0
      %1291 = vmatpush.bf16.msra.mxu0 0
      %1292 = vmatpush.bf16.msra.mxu0 0
      %1293 = vmatpush.bf16.msra.mxu0 0
      %1294 = vmatpush.bf16.msra.mxu0 0
      %1295 = vmatpush.bf16.msra.mxu0 0
      %1296 = vmatpush.bf16.msra.mxu0 0
      %1297 = vmatpush.bf16.msra.mxu0 %v1288
      %1298 = vmatmul.bf16.gmra.mxu0 %v1240
      %v1299 = vpop.f32.mrf.mxu0
      %v1300 = vadd.f32 0.0, %v1299
      %v1301 = vpop.f32.mrf.mxu0
      %v1302 = vadd.f32 0.0, %v1301
      %1303 = vmatmul.bf16.gmra.mxu0 %v1243
      %v1304 = vpop.f32.mrf.mxu0
      %v1305 = vadd.f32 0.0, %v1304
      %v1306 = vpop.f32.mrf.mxu0
      %v1307 = vadd.f32 0.0, %v1306
      %1308 = vmatmul.bf16.gmra.mxu0 %v1246
      %v1309 = vpop.f32.mrf.mxu0
      %v1310 = vadd.f32 0.0, %v1309
      %v1311 = vpop.f32.mrf.mxu0
      %v1312 = vadd.f32 0.0, %v1311
      %1313 = vmatmul.bf16.gmra.mxu0 %v1249
      %v1314 = vpop.f32.mrf.mxu0
      %v1315 = vadd.f32 0.0, %v1314
      %v1316 = vpop.f32.mrf.mxu0
      %v1317 = vadd.f32 0.0, %v1316
      %1318 = vmatmul.bf16.gmra.mxu0 %v1252
      %v1319 = vpop.f32.mrf.mxu0
      %v1320 = vadd.f32 0.0, %v1319
      %v1321 = vpop.f32.mrf.mxu0
      %v1322 = vadd.f32 0.0, %v1321
      %1323 = vmatmul.bf16.gmra.mxu0 %v1255
      %v1324 = vpop.f32.mrf.mxu0
      %v1325 = vadd.f32 0.0, %v1324
      %v1326 = vpop.f32.mrf.mxu0
      %v1327 = vadd.f32 0.0, %v1326
      %1328 = vmatmul.bf16.gmra.mxu0 %v1258
      %v1329 = vpop.f32.mrf.mxu0
      %v1330 = vadd.f32 0.0, %v1329
      %v1331 = vpop.f32.mrf.mxu0
      %v1332 = vadd.f32 0.0, %v1331
      %1333 = vmatmul.bf16.gmra.mxu0 %v1261
      %v1334 = vpop.f32.mrf.mxu0
      %v1335 = vadd.f32 0.0, %v1334
      %v1336 = vpop.f32.mrf.mxu0
      %v1337 = vadd.f32 0.0, %v1336
      %1338 = vmatmul.bf16.gmra.mxu0 %v1264
      %v1339 = vpop.f32.mrf.mxu0
      %v1340 = vadd.f32 0.0, %v1339
      %v1341 = vpop.f32.mrf.mxu0
      %v1342 = vadd.f32 0.0, %v1341
      %1343 = vmatmul.bf16.gmra.mxu0 %v1267
      %v1344 = vpop.f32.mrf.mxu0
      %v1345 = vadd.f32 0.0, %v1344
      %v1346 = vpop.f32.mrf.mxu0
      %v1347 = vadd.f32 0.0, %v1346
      %1348 = vmatmul.bf16.gmra.mxu0 %v1270
      %v1349 = vpop.f32.mrf.mxu0
      %v1350 = vadd.f32 0.0, %v1349
      %v1351 = vpop.f32.mrf.mxu0
      %v1352 = vadd.f32 0.0, %v1351
      %1353 = vmatmul.bf16.gmra.mxu0 %v1273
      %v1354 = vpop.f32.mrf.mxu0
      %v1355 = vadd.f32 0.0, %v1354
      %v1356 = vpop.f32.mrf.mxu0
      %v1357 = vadd.f32 0.0, %v1356
      %1358 = vmatmul.bf16.gmra.mxu0 %v1276
      %v1359 = vpop.f32.mrf.mxu0
      %v1360 = vadd.f32 0.0, %v1359
      %v1361 = vpop.f32.mrf.mxu0
      %v1362 = vadd.f32 0.0, %v1361
      %1363 = vmatmul.bf16.gmra.mxu0 %v1279
      %v1364 = vpop.f32.mrf.mxu0
      %v1365 = vadd.f32 0.0, %v1364
      %v1366 = vpop.f32.mrf.mxu0
      %v1367 = vadd.f32 0.0, %v1366
      %1368 = vmatmul.bf16.gmra.mxu0 %v1282
      %v1369 = vpop.f32.mrf.mxu0
      %v1370 = vadd.f32 0.0, %v1369
      %v1371 = vpop.f32.mrf.mxu0
      %v1372 = vadd.f32 0.0, %v1371
      %1373 = vmatmul.bf16.gmra.mxu0 %v1285
      %v1374 = vpop.f32.mrf.mxu0
      %v1375 = vadd.f32 0.0, %v1374
      %v1376 = vpop.f32.mrf.mxu0
      %v1377 = vadd.f32 0.0, %v1376
      %1378 = vdwg.mxu0
      %v1379 = vadd.f32 %v1157, %v1300
      %v1380 = vadd.f32 %v1158, %v1302
      %v1381 = vadd.f32 %v1159, %v1305
      %v1382 = vadd.f32 %v1160, %v1307
      %v1383 = vadd.f32 %v1161, %v1310
      %v1384 = vadd.f32 %v1162, %v1312
      %v1385 = vadd.f32 %v1163, %v1315
      %v1386 = vadd.f32 %v1164, %v1317
      %v1387 = vadd.f32 %v1165, %v1320
      %v1388 = vadd.f32 %v1166, %v1322
      %v1389 = vadd.f32 %v1167, %v1325
      %v1390 = vadd.f32 %v1168, %v1327
      %v1391 = vadd.f32 %v1169, %v1330
      %v1392 = vadd.f32 %v1170, %v1332
      %v1393 = vadd.f32 %v1171, %v1335
      %v1394 = vadd.f32 %v1172, %v1337
      %v1395 = vadd.f32 %v1173, %v1340
      %v1396 = vadd.f32 %v1174, %v1342
      %v1397 = vadd.f32 %v1175, %v1345
      %v1398 = vadd.f32 %v1176, %v1347
      %v1399 = vadd.f32 %v1177, %v1350
      %v1400 = vadd.f32 %v1178, %v1352
      %v1401 = vadd.f32 %v1179, %v1355
      %v1402 = vadd.f32 %v1180, %v1357
      %v1403 = vadd.f32 %v1181, %v1360
      %v1404 = vadd.f32 %v1182, %v1362
      %v1405 = vadd.f32 %v1183, %v1365
      %v1406 = vadd.f32 %v1184, %v1367
      %v1407 = vadd.f32 %v1185, %v1370
      %v1408 = vadd.f32 %v1186, %v1372
      %v1409 = vadd.f32 %v1187, %v1375
      %v1410 = vadd.f32 %v1188, %v1377
      %v1411 = vld [vmem:[%s261 + $0x2] sm:$0xff]
      %v1412 = vld [vmem:[%s261 + $0xa] sm:$0xff]
      %v1413 = vld [vmem:[%s261 + $0x1a] sm:$0xff]
      %v1414 = vld [vmem:[%s261 + $0x22] sm:$0xff]
      %v1415 = vld [vmem:[%s261 + $0x32] sm:$0xff]
      %v1416 = vld [vmem:[%s261 + $0x3a] sm:$0xff]
      %v1417 = vld [vmem:[%s261 + $0x4a] sm:$0xff]
      %v1418 = vld [vmem:[%s261 + $0x52] sm:$0xff]
      %v1419 = vld [vmem:[%s261 + $0x62] sm:$0xff]
      %v1420 = vld [vmem:[%s261 + $0x6a] sm:$0xff]
      %v1421 = vld [vmem:[%s261 + $0x7a] sm:$0xff]
      %v1422 = vld [vmem:[%s261 + $0x82] sm:$0xff]
      %v1423 = vld [vmem:[%s261 + $0x92] sm:$0xff]
      %v1424 = vld [vmem:[%s261 + $0x9a] sm:$0xff]
      %v1425 = vld [vmem:[%s261 + $0xaa] sm:$0xff]
      %v1426 = vld [vmem:[%s261 + $0xb2] sm:$0xff]
      %v1427 = vld [vmem:[%s261 + $0xc2] sm:$0xff]
      %v1428 = vld [vmem:[%s261 + $0xca] sm:$0xff]
      %v1429 = vld [vmem:[%s261 + $0xda] sm:$0xff]
      %v1430 = vld [vmem:[%s261 + $0xe2] sm:$0xff]
      %v1431 = vld [vmem:[%s261 + $0xf2] sm:$0xff]
      %v1432 = vld [vmem:[%s261 + $0xfa] sm:$0xff]
      %v1433 = vld [vmem:[%s261 + $0x10a] sm:$0xff]
      %v1434 = vld [vmem:[%s261 + $0x112] sm:$0xff]
      %v1435 = vld [vmem:[%s261 + $0x122] sm:$0xff]
      %v1436 = vld [vmem:[%s261 + $0x12a] sm:$0xff]
      %v1437 = vld [vmem:[%s261 + $0x13a] sm:$0xff]
      %v1438 = vld [vmem:[%s261 + $0x142] sm:$0xff]
      %v1439 = vld [vmem:[%s261 + $0x152] sm:$0xff]
      %v1440 = vld [vmem:[%s261 + $0x15a] sm:$0xff]
      %v1441 = vld [vmem:[%s261 + $0x16a] sm:$0xff]
      %v1442 = vld [vmem:[%s261 + $0x172] sm:$0xff]
      %v1443 = vpack.c.bf16 %v1412, %v1411
      %v1444 = vpack.c.bf16 %v1414, %v1413
      %v1445 = vpack.c.bf16 %v1416, %v1415
      %v1446 = vpack.c.bf16 %v1418, %v1417
      %v1447 = vpack.c.bf16 %v1420, %v1419
      %v1448 = vpack.c.bf16 %v1422, %v1421
      %v1449 = vpack.c.bf16 %v1424, %v1423
      %v1450 = vpack.c.bf16 %v1426, %v1425
      %v1451 = vpack.c.bf16 %v1428, %v1427
      %v1452 = vpack.c.bf16 %v1430, %v1429
      %v1453 = vpack.c.bf16 %v1432, %v1431
      %v1454 = vpack.c.bf16 %v1434, %v1433
      %v1455 = vpack.c.bf16 %v1436, %v1435
      %v1456 = vpack.c.bf16 %v1438, %v1437
      %v1457 = vpack.c.bf16 %v1440, %v1439
      %v1458 = vpack.c.bf16 %v1442, %v1441
      %s1459 = scalar_lea.vmem %s1, 10
      %v1460 = vld [vmem:[%s1459] sm:$0x3]
      %v1462 = vsel %vm205, %v1443, 0
      %v1465 = vsel %vm205, %v1444, 0
      %v1468 = vsel %vm205, %v1445, 0
      %v1471 = vsel %vm205, %v1446, 0
      %v1474 = vsel %vm205, %v1447, 0
      %v1477 = vsel %vm205, %v1448, 0
      %v1480 = vsel %vm205, %v1449, 0
      %v1483 = vsel %vm205, %v1450, 0
      %v1486 = vsel %vm205, %v1451, 0
      %v1489 = vsel %vm205, %v1452, 0
      %v1492 = vsel %vm205, %v1453, 0
      %v1495 = vsel %vm205, %v1454, 0
      %v1498 = vsel %vm205, %v1455, 0
      %v1501 = vsel %vm205, %v1456, 0
      %v1504 = vsel %vm205, %v1457, 0
      %v1507 = vsel %vm205, %v1458, 0
      %v1510 = vand.u32 %v1460, %v398
      %1512 = vmatpush.bf16.msra.mxu0 0
      %1513 = vmatpush.bf16.msra.mxu0 0
      %1514 = vmatpush.bf16.msra.mxu0 0
      %1515 = vmatpush.bf16.msra.mxu0 0
      %1516 = vmatpush.bf16.msra.mxu0 0
      %1517 = vmatpush.bf16.msra.mxu0 0
      %1518 = vmatpush.bf16.msra.mxu0 0
      %1519 = vmatpush.bf16.msra.mxu0 %v1510
      %1520 = vmatmul.bf16.gmra.mxu0 %v1462
      %v1521 = vpop.f32.mrf.mxu0
      %v1522 = vadd.f32 0.0, %v1521
      %v1523 = vpop.f32.mrf.mxu0
      %v1524 = vadd.f32 0.0, %v1523
      %1525 = vmatmul.bf16.gmra.mxu0 %v1465
      %v1526 = vpop.f32.mrf.mxu0
      %v1527 = vadd.f32 0.0, %v1526
      %v1528 = vpop.f32.mrf.mxu0
      %v1529 = vadd.f32 0.0, %v1528
      %1530 = vmatmul.bf16.gmra.mxu0 %v1468
      %v1531 = vpop.f32.mrf.mxu0
      %v1532 = vadd.f32 0.0, %v1531
      %v1533 = vpop.f32.mrf.mxu0
      %v1534 = vadd.f32 0.0, %v1533
      %1535 = vmatmul.bf16.gmra.mxu0 %v1471
      %v1536 = vpop.f32.mrf.mxu0
      %v1537 = vadd.f32 0.0, %v1536
      %v1538 = vpop.f32.mrf.mxu0
      %v1539 = vadd.f32 0.0, %v1538
      %1540 = vmatmul.bf16.gmra.mxu0 %v1474
      %v1541 = vpop.f32.mrf.mxu0
      %v1542 = vadd.f32 0.0, %v1541
      %v1543 = vpop.f32.mrf.mxu0
      %v1544 = vadd.f32 0.0, %v1543
      %1545 = vmatmul.bf16.gmra.mxu0 %v1477
      %v1546 = vpop.f32.mrf.mxu0
      %v1547 = vadd.f32 0.0, %v1546
      %v1548 = vpop.f32.mrf.mxu0
      %v1549 = vadd.f32 0.0, %v1548
      %1550 = vmatmul.bf16.gmra.mxu0 %v1480
      %v1551 = vpop.f32.mrf.mxu0
      %v1552 = vadd.f32 0.0, %v1551
      %v1553 = vpop.f32.mrf.mxu0
      %v1554 = vadd.f32 0.0, %v1553
      %1555 = vmatmul.bf16.gmra.mxu0 %v1483
      %v1556 = vpop.f32.mrf.mxu0
      %v1557 = vadd.f32 0.0, %v1556
      %v1558 = vpop.f32.mrf.mxu0
      %v1559 = vadd.f32 0.0, %v1558
      %1560 = vmatmul.bf16.gmra.mxu0 %v1486
      %v1561 = vpop.f32.mrf.mxu0
      %v1562 = vadd.f32 0.0, %v1561
      %v1563 = vpop.f32.mrf.mxu0
      %v1564 = vadd.f32 0.0, %v1563
      %1565 = vmatmul.bf16.gmra.mxu0 %v1489
      %v1566 = vpop.f32.mrf.mxu0
      %v1567 = vadd.f32 0.0, %v1566
      %v1568 = vpop.f32.mrf.mxu0
      %v1569 = vadd.f32 0.0, %v1568
      %1570 = vmatmul.bf16.gmra.mxu0 %v1492
      %v1571 = vpop.f32.mrf.mxu0
      %v1572 = vadd.f32 0.0, %v1571
      %v1573 = vpop.f32.mrf.mxu0
      %v1574 = vadd.f32 0.0, %v1573
      %1575 = vmatmul.bf16.gmra.mxu0 %v1495
      %v1576 = vpop.f32.mrf.mxu0
      %v1577 = vadd.f32 0.0, %v1576
      %v1578 = vpop.f32.mrf.mxu0
      %v1579 = vadd.f32 0.0, %v1578
      %1580 = vmatmul.bf16.gmra.mxu0 %v1498
      %v1581 = vpop.f32.mrf.mxu0
      %v1582 = vadd.f32 0.0, %v1581
      %v1583 = vpop.f32.mrf.mxu0
      %v1584 = vadd.f32 0.0, %v1583
      %1585 = vmatmul.bf16.gmra.mxu0 %v1501
      %v1586 = vpop.f32.mrf.mxu0
      %v1587 = vadd.f32 0.0, %v1586
      %v1588 = vpop.f32.mrf.mxu0
      %v1589 = vadd.f32 0.0, %v1588
      %1590 = vmatmul.bf16.gmra.mxu0 %v1504
      %v1591 = vpop.f32.mrf.mxu0
      %v1592 = vadd.f32 0.0, %v1591
      %v1593 = vpop.f32.mrf.mxu0
      %v1594 = vadd.f32 0.0, %v1593
      %1595 = vmatmul.bf16.gmra.mxu0 %v1507
      %v1596 = vpop.f32.mrf.mxu0
      %v1597 = vadd.f32 0.0, %v1596
      %v1598 = vpop.f32.mrf.mxu0
      %v1599 = vadd.f32 0.0, %v1598
      %1600 = vdwg.mxu0
      %v1601 = vadd.f32 %v1379, %v1522
      %v1602 = vadd.f32 %v1380, %v1524
      %v1603 = vadd.f32 %v1381, %v1527
      %v1604 = vadd.f32 %v1382, %v1529
      %v1605 = vadd.f32 %v1383, %v1532
      %v1606 = vadd.f32 %v1384, %v1534
      %v1607 = vadd.f32 %v1385, %v1537
      %v1608 = vadd.f32 %v1386, %v1539
      %v1609 = vadd.f32 %v1387, %v1542
      %v1610 = vadd.f32 %v1388, %v1544
      %v1611 = vadd.f32 %v1389, %v1547
      %v1612 = vadd.f32 %v1390, %v1549
      %v1613 = vadd.f32 %v1391, %v1552
      %v1614 = vadd.f32 %v1392, %v1554
      %v1615 = vadd.f32 %v1393, %v1557
      %v1616 = vadd.f32 %v1394, %v1559
      %v1617 = vadd.f32 %v1395, %v1562
      %v1618 = vadd.f32 %v1396, %v1564
      %v1619 = vadd.f32 %v1397, %v1567
      %v1620 = vadd.f32 %v1398, %v1569
      %v1621 = vadd.f32 %v1399, %v1572
      %v1622 = vadd.f32 %v1400, %v1574
      %v1623 = vadd.f32 %v1401, %v1577
      %v1624 = vadd.f32 %v1402, %v1579
      %v1625 = vadd.f32 %v1403, %v1582
      %v1626 = vadd.f32 %v1404, %v1584
      %v1627 = vadd.f32 %v1405, %v1587
      %v1628 = vadd.f32 %v1406, %v1589
      %v1629 = vadd.f32 %v1407, %v1592
      %v1630 = vadd.f32 %v1408, %v1594
      %v1631 = vadd.f32 %v1409, %v1597
      %v1632 = vadd.f32 %v1410, %v1599
      %s1633 = scalar_lea.vmem [#allocation2], 48
      %v1634 = vld [vmem:[%s1633] sm:$0xff]
      %v1635 = vld [vmem:[%s1633 + $0x8] sm:$0xff]
      %v1636 = vld [vmem:[%s1633 + $0x18] sm:$0xff]
      %v1637 = vld [vmem:[%s1633 + $0x20] sm:$0xff]
      %v1638 = vld [vmem:[%s1633 + $0x30] sm:$0xff]
      %v1639 = vld [vmem:[%s1633 + $0x38] sm:$0xff]
      %v1640 = vld [vmem:[%s1633 + $0x48] sm:$0xff]
      %v1641 = vld [vmem:[%s1633 + $0x50] sm:$0xff]
      %v1642 = vld [vmem:[%s1633 + $0x60] sm:$0xff]
      %v1643 = vld [vmem:[%s1633 + $0x68] sm:$0xff]
      %v1644 = vld [vmem:[%s1633 + $0x78] sm:$0xff]
      %v1645 = vld [vmem:[%s1633 + $0x80] sm:$0xff]
      %v1646 = vld [vmem:[%s1633 + $0x90] sm:$0xff]
      %v1647 = vld [vmem:[%s1633 + $0x98] sm:$0xff]
      %v1648 = vld [vmem:[%s1633 + $0xa8] sm:$0xff]
      %v1649 = vld [vmem:[%s1633 + $0xb0] sm:$0xff]
      %v1650 = vld [vmem:[%s1633 + $0xc0] sm:$0xff]
      %v1651 = vld [vmem:[%s1633 + $0xc8] sm:$0xff]
      %v1652 = vld [vmem:[%s1633 + $0xd8] sm:$0xff]
      %v1653 = vld [vmem:[%s1633 + $0xe0] sm:$0xff]
      %v1654 = vld [vmem:[%s1633 + $0xf0] sm:$0xff]
      %v1655 = vld [vmem:[%s1633 + $0xf8] sm:$0xff]
      %v1656 = vld [vmem:[%s1633 + $0x108] sm:$0xff]
      %v1657 = vld [vmem:[%s1633 + $0x110] sm:$0xff]
      %v1658 = vld [vmem:[%s1633 + $0x120] sm:$0xff]
      %v1659 = vld [vmem:[%s1633 + $0x128] sm:$0xff]
      %v1660 = vld [vmem:[%s1633 + $0x138] sm:$0xff]
      %v1661 = vld [vmem:[%s1633 + $0x140] sm:$0xff]
      %v1662 = vld [vmem:[%s1633 + $0x150] sm:$0xff]
      %v1663 = vld [vmem:[%s1633 + $0x158] sm:$0xff]
      %v1664 = vld [vmem:[%s1633 + $0x168] sm:$0xff]
      %v1665 = vld [vmem:[%s1633 + $0x170] sm:$0xff]
      %v1666 = vpack.c.bf16 %v1635, %v1634
      %v1667 = vpack.c.bf16 %v1637, %v1636
      %v1668 = vpack.c.bf16 %v1639, %v1638
      %v1669 = vpack.c.bf16 %v1641, %v1640
      %v1670 = vpack.c.bf16 %v1643, %v1642
      %v1671 = vpack.c.bf16 %v1645, %v1644
      %v1672 = vpack.c.bf16 %v1647, %v1646
      %v1673 = vpack.c.bf16 %v1649, %v1648
      %v1674 = vpack.c.bf16 %v1651, %v1650
      %v1675 = vpack.c.bf16 %v1653, %v1652
      %v1676 = vpack.c.bf16 %v1655, %v1654
      %v1677 = vpack.c.bf16 %v1657, %v1656
      %v1678 = vpack.c.bf16 %v1659, %v1658
      %v1679 = vpack.c.bf16 %v1661, %v1660
      %v1680 = vpack.c.bf16 %v1663, %v1662
      %v1681 = vpack.c.bf16 %v1665, %v1664
      %s1682 = scalar_lea.vmem %s1, 12
      %v1683 = vld [vmem:[%s1682] sm:$0x3]
      %v1685 = vsel %vm205, %v1666, 0
      %v1688 = vsel %vm205, %v1667, 0
      %v1691 = vsel %vm205, %v1668, 0
      %v1694 = vsel %vm205, %v1669, 0
      %v1697 = vsel %vm205, %v1670, 0
      %v1700 = vsel %vm205, %v1671, 0
      %v1703 = vsel %vm205, %v1672, 0
      %v1706 = vsel %vm205, %v1673, 0
      %v1709 = vsel %vm205, %v1674, 0
      %v1712 = vsel %vm205, %v1675, 0
      %v1715 = vsel %vm205, %v1676, 0
      %v1718 = vsel %vm205, %v1677, 0
      %v1721 = vsel %vm205, %v1678, 0
      %v1724 = vsel %vm205, %v1679, 0
      %v1727 = vsel %vm205, %v1680, 0
      %v1730 = vsel %vm205, %v1681, 0
      %v1733 = vand.u32 %v1683, %v398
      %1735 = vmatpush.bf16.msra.mxu0 0
      %1736 = vmatpush.bf16.msra.mxu0 0
      %1737 = vmatpush.bf16.msra.mxu0 0
      %1738 = vmatpush.bf16.msra.mxu0 0
      %1739 = vmatpush.bf16.msra.mxu0 0
      %1740 = vmatpush.bf16.msra.mxu0 0
      %1741 = vmatpush.bf16.msra.mxu0 0
      %1742 = vmatpush.bf16.msra.mxu0 %v1733
      %1743 = vmatmul.bf16.gmra.mxu0 %v1685
      %v1744 = vpop.f32.mrf.mxu0
      %v1745 = vadd.f32 0.0, %v1744
      %v1746 = vpop.f32.mrf.mxu0
      %v1747 = vadd.f32 0.0, %v1746
      %1748 = vmatmul.bf16.gmra.mxu0 %v1688
      %v1749 = vpop.f32.mrf.mxu0
      %v1750 = vadd.f32 0.0, %v1749
      %v1751 = vpop.f32.mrf.mxu0
      %v1752 = vadd.f32 0.0, %v1751
      %1753 = vmatmul.bf16.gmra.mxu0 %v1691
      %v1754 = vpop.f32.mrf.mxu0
      %v1755 = vadd.f32 0.0, %v1754
      %v1756 = vpop.f32.mrf.mxu0
      %v1757 = vadd.f32 0.0, %v1756
      %1758 = vmatmul.bf16.gmra.mxu0 %v1694
      %v1759 = vpop.f32.mrf.mxu0
      %v1760 = vadd.f32 0.0, %v1759
      %v1761 = vpop.f32.mrf.mxu0
      %v1762 = vadd.f32 0.0, %v1761
      %1763 = vmatmul.bf16.gmra.mxu0 %v1697
      %v1764 = vpop.f32.mrf.mxu0
      %v1765 = vadd.f32 0.0, %v1764
      %v1766 = vpop.f32.mrf.mxu0
      %v1767 = vadd.f32 0.0, %v1766
      %1768 = vmatmul.bf16.gmra.mxu0 %v1700
      %v1769 = vpop.f32.mrf.mxu0
      %v1770 = vadd.f32 0.0, %v1769
      %v1771 = vpop.f32.mrf.mxu0
      %v1772 = vadd.f32 0.0, %v1771
      %1773 = vmatmul.bf16.gmra.mxu0 %v1703
      %v1774 = vpop.f32.mrf.mxu0
      %v1775 = vadd.f32 0.0, %v1774
      %v1776 = vpop.f32.mrf.mxu0
      %v1777 = vadd.f32 0.0, %v1776
      %1778 = vmatmul.bf16.gmra.mxu0 %v1706
      %v1779 = vpop.f32.mrf.mxu0
      %v1780 = vadd.f32 0.0, %v1779
      %v1781 = vpop.f32.mrf.mxu0
      %v1782 = vadd.f32 0.0, %v1781
      %1783 = vmatmul.bf16.gmra.mxu0 %v1709
      %v1784 = vpop.f32.mrf.mxu0
      %v1785 = vadd.f32 0.0, %v1784
      %v1786 = vpop.f32.mrf.mxu0
      %v1787 = vadd.f32 0.0, %v1786
      %1788 = vmatmul.bf16.gmra.mxu0 %v1712
      %v1789 = vpop.f32.mrf.mxu0
      %v1790 = vadd.f32 0.0, %v1789
      %v1791 = vpop.f32.mrf.mxu0
      %v1792 = vadd.f32 0.0, %v1791
      %1793 = vmatmul.bf16.gmra.mxu0 %v1715
      %v1794 = vpop.f32.mrf.mxu0
      %v1795 = vadd.f32 0.0, %v1794
      %v1796 = vpop.f32.mrf.mxu0
      %v1797 = vadd.f32 0.0, %v1796
      %1798 = vmatmul.bf16.gmra.mxu0 %v1718
      %v1799 = vpop.f32.mrf.mxu0
      %v1800 = vadd.f32 0.0, %v1799
      %v1801 = vpop.f32.mrf.mxu0
      %v1802 = vadd.f32 0.0, %v1801
      %1803 = vmatmul.bf16.gmra.mxu0 %v1721
      %v1804 = vpop.f32.mrf.mxu0
      %v1805 = vadd.f32 0.0, %v1804
      %v1806 = vpop.f32.mrf.mxu0
      %v1807 = vadd.f32 0.0, %v1806
      %1808 = vmatmul.bf16.gmra.mxu0 %v1724
      %v1809 = vpop.f32.mrf.mxu0
      %v1810 = vadd.f32 0.0, %v1809
      %v1811 = vpop.f32.mrf.mxu0
      %v1812 = vadd.f32 0.0, %v1811
      %1813 = vmatmul.bf16.gmra.mxu0 %v1727
      %v1814 = vpop.f32.mrf.mxu0
      %v1815 = vadd.f32 0.0, %v1814
      %v1816 = vpop.f32.mrf.mxu0
      %v1817 = vadd.f32 0.0, %v1816
      %1818 = vmatmul.bf16.gmra.mxu0 %v1730
      %v1819 = vpop.f32.mrf.mxu0
      %v1820 = vadd.f32 0.0, %v1819
      %v1821 = vpop.f32.mrf.mxu0
      %v1822 = vadd.f32 0.0, %v1821
      %1823 = vdwg.mxu0
      %v1824 = vadd.f32 %v1601, %v1745
      %v1825 = vadd.f32 %v1602, %v1747
      %v1826 = vadd.f32 %v1603, %v1750
      %v1827 = vadd.f32 %v1604, %v1752
      %v1828 = vadd.f32 %v1605, %v1755
      %v1829 = vadd.f32 %v1606, %v1757
      %v1830 = vadd.f32 %v1607, %v1760
      %v1831 = vadd.f32 %v1608, %v1762
      %v1832 = vadd.f32 %v1609, %v1765
      %v1833 = vadd.f32 %v1610, %v1767
      %v1834 = vadd.f32 %v1611, %v1770
      %v1835 = vadd.f32 %v1612, %v1772
      %v1836 = vadd.f32 %v1613, %v1775
      %v1837 = vadd.f32 %v1614, %v1777
      %v1838 = vadd.f32 %v1615, %v1780
      %v1839 = vadd.f32 %v1616, %v1782
      %v1840 = vadd.f32 %v1617, %v1785
      %v1841 = vadd.f32 %v1618, %v1787
      %v1842 = vadd.f32 %v1619, %v1790
      %v1843 = vadd.f32 %v1620, %v1792
      %v1844 = vadd.f32 %v1621, %v1795
      %v1845 = vadd.f32 %v1622, %v1797
      %v1846 = vadd.f32 %v1623, %v1800
      %v1847 = vadd.f32 %v1624, %v1802
      %v1848 = vadd.f32 %v1625, %v1805
      %v1849 = vadd.f32 %v1626, %v1807
      %v1850 = vadd.f32 %v1627, %v1810
      %v1851 = vadd.f32 %v1628, %v1812
      %v1852 = vadd.f32 %v1629, %v1815
      %v1853 = vadd.f32 %v1630, %v1817
      %v1854 = vadd.f32 %v1631, %v1820
      %v1855 = vadd.f32 %v1632, %v1822
      %v1856 = vld [vmem:[%s1633 + $0x1] sm:$0xff]
      %v1857 = vld [vmem:[%s1633 + $0x9] sm:$0xff]
      %v1858 = vld [vmem:[%s1633 + $0x19] sm:$0xff]
      %v1859 = vld [vmem:[%s1633 + $0x21] sm:$0xff]
      %v1860 = vld [vmem:[%s1633 + $0x31] sm:$0xff]
      %v1861 = vld [vmem:[%s1633 + $0x39] sm:$0xff]
      %v1862 = vld [vmem:[%s1633 + $0x49] sm:$0xff]
      %v1863 = vld [vmem:[%s1633 + $0x51] sm:$0xff]
      %v1864 = vld [vmem:[%s1633 + $0x61] sm:$0xff]
      %v1865 = vld [vmem:[%s1633 + $0x69] sm:$0xff]
      %v1866 = vld [vmem:[%s1633 + $0x79] sm:$0xff]
      %v1867 = vld [vmem:[%s1633 + $0x81] sm:$0xff]
      %v1868 = vld [vmem:[%s1633 + $0x91] sm:$0xff]
      %v1869 = vld [vmem:[%s1633 + $0x99] sm:$0xff]
      %v1870 = vld [vmem:[%s1633 + $0xa9] sm:$0xff]
      %v1871 = vld [vmem:[%s1633 + $0xb1] sm:$0xff]
      %v1872 = vld [vmem:[%s1633 + $0xc1] sm:$0xff]
      %v1873 = vld [vmem:[%s1633 + $0xc9] sm:$0xff]
      %v1874 = vld [vmem:[%s1633 + $0xd9] sm:$0xff]
      %v1875 = vld [vmem:[%s1633 + $0xe1] sm:$0xff]
      %v1876 = vld [vmem:[%s1633 + $0xf1] sm:$0xff]
      %v1877 = vld [vmem:[%s1633 + $0xf9] sm:$0xff]
      %v1878 = vld [vmem:[%s1633 + $0x109] sm:$0xff]
      %v1879 = vld [vmem:[%s1633 + $0x111] sm:$0xff]
      %v1880 = vld [vmem:[%s1633 + $0x121] sm:$0xff]
      %v1881 = vld [vmem:[%s1633 + $0x129] sm:$0xff]
      %v1882 = vld [vmem:[%s1633 + $0x139] sm:$0xff]
      %v1883 = vld [vmem:[%s1633 + $0x141] sm:$0xff]
      %v1884 = vld [vmem:[%s1633 + $0x151] sm:$0xff]
      %v1885 = vld [vmem:[%s1633 + $0x159] sm:$0xff]
      %v1886 = vld [vmem:[%s1633 + $0x169] sm:$0xff]
      %v1887 = vld [vmem:[%s1633 + $0x171] sm:$0xff]
      %v1888 = vpack.c.bf16 %v1857, %v1856
      %v1889 = vpack.c.bf16 %v1859, %v1858
      %v1890 = vpack.c.bf16 %v1861, %v1860
      %v1891 = vpack.c.bf16 %v1863, %v1862
      %v1892 = vpack.c.bf16 %v1865, %v1864
      %v1893 = vpack.c.bf16 %v1867, %v1866
      %v1894 = vpack.c.bf16 %v1869, %v1868
      %v1895 = vpack.c.bf16 %v1871, %v1870
      %v1896 = vpack.c.bf16 %v1873, %v1872
      %v1897 = vpack.c.bf16 %v1875, %v1874
      %v1898 = vpack.c.bf16 %v1877, %v1876
      %v1899 = vpack.c.bf16 %v1879, %v1878
      %v1900 = vpack.c.bf16 %v1881, %v1880
      %v1901 = vpack.c.bf16 %v1883, %v1882
      %v1902 = vpack.c.bf16 %v1885, %v1884
      %v1903 = vpack.c.bf16 %v1887, %v1886
      %s1904 = scalar_lea.vmem %s1, 14
      %v1905 = vld [vmem:[%s1904] sm:$0x3]
      %v1907 = vsel %vm205, %v1888, 0
      %v1910 = vsel %vm205, %v1889, 0
      %v1913 = vsel %vm205, %v1890, 0
      %v1916 = vsel %vm205, %v1891, 0
      %v1919 = vsel %vm205, %v1892, 0
      %v1922 = vsel %vm205, %v1893, 0
      %v1925 = vsel %vm205, %v1894, 0
      %v1928 = vsel %vm205, %v1895, 0
      %v1931 = vsel %vm205, %v1896, 0
      %v1934 = vsel %vm205, %v1897, 0
      %v1937 = vsel %vm205, %v1898, 0
      %v1940 = vsel %vm205, %v1899, 0
      %v1943 = vsel %vm205, %v1900, 0
      %v1946 = vsel %vm205, %v1901, 0
      %v1949 = vsel %vm205, %v1902, 0
      %v1952 = vsel %vm205, %v1903, 0
      %v1955 = vand.u32 %v1905, %v398
      %1957 = vmatpush.bf16.msra.mxu0 0
      %1958 = vmatpush.bf16.msra.mxu0 0
      %1959 = vmatpush.bf16.msra.mxu0 0
      %1960 = vmatpush.bf16.msra.mxu0 0
      %1961 = vmatpush.bf16.msra.mxu0 0
      %1962 = vmatpush.bf16.msra.mxu0 0
      %1963 = vmatpush.bf16.msra.mxu0 0
      %1964 = vmatpush.bf16.msra.mxu0 %v1955
      %1965 = vmatmul.bf16.gmra.mxu0 %v1907
      %v1966 = vpop.f32.mrf.mxu0
      %v1967 = vadd.f32 0.0, %v1966
      %v1968 = vpop.f32.mrf.mxu0
      %v1969 = vadd.f32 0.0, %v1968
      %1970 = vmatmul.bf16.gmra.mxu0 %v1910
      %v1971 = vpop.f32.mrf.mxu0
      %v1972 = vadd.f32 0.0, %v1971
      %v1973 = vpop.f32.mrf.mxu0
      %v1974 = vadd.f32 0.0, %v1973
      %1975 = vmatmul.bf16.gmra.mxu0 %v1913
      %v1976 = vpop.f32.mrf.mxu0
      %v1977 = vadd.f32 0.0, %v1976
      %v1978 = vpop.f32.mrf.mxu0
      %v1979 = vadd.f32 0.0, %v1978
      %1980 = vmatmul.bf16.gmra.mxu0 %v1916
      %v1981 = vpop.f32.mrf.mxu0
      %v1982 = vadd.f32 0.0, %v1981
      %v1983 = vpop.f32.mrf.mxu0
      %v1984 = vadd.f32 0.0, %v1983
      %1985 = vmatmul.bf16.gmra.mxu0 %v1919
      %v1986 = vpop.f32.mrf.mxu0
      %v1987 = vadd.f32 0.0, %v1986
      %v1988 = vpop.f32.mrf.mxu0
      %v1989 = vadd.f32 0.0, %v1988
      %1990 = vmatmul.bf16.gmra.mxu0 %v1922
      %v1991 = vpop.f32.mrf.mxu0
      %v1992 = vadd.f32 0.0, %v1991
      %v1993 = vpop.f32.mrf.mxu0
      %v1994 = vadd.f32 0.0, %v1993
      %1995 = vmatmul.bf16.gmra.mxu0 %v1925
      %v1996 = vpop.f32.mrf.mxu0
      %v1997 = vadd.f32 0.0, %v1996
      %v1998 = vpop.f32.mrf.mxu0
      %v1999 = vadd.f32 0.0, %v1998
      %2000 = vmatmul.bf16.gmra.mxu0 %v1928
      %v2001 = vpop.f32.mrf.mxu0
      %v2002 = vadd.f32 0.0, %v2001
      %v2003 = vpop.f32.mrf.mxu0
      %v2004 = vadd.f32 0.0, %v2003
      %2005 = vmatmul.bf16.gmra.mxu0 %v1931
      %v2006 = vpop.f32.mrf.mxu0
      %v2007 = vadd.f32 0.0, %v2006
      %v2008 = vpop.f32.mrf.mxu0
      %v2009 = vadd.f32 0.0, %v2008
      %2010 = vmatmul.bf16.gmra.mxu0 %v1934
      %v2011 = vpop.f32.mrf.mxu0
      %v2012 = vadd.f32 0.0, %v2011
      %v2013 = vpop.f32.mrf.mxu0
      %v2014 = vadd.f32 0.0, %v2013
      %2015 = vmatmul.bf16.gmra.mxu0 %v1937
      %v2016 = vpop.f32.mrf.mxu0
      %v2017 = vadd.f32 0.0, %v2016
      %v2018 = vpop.f32.mrf.mxu0
      %v2019 = vadd.f32 0.0, %v2018
      %2020 = vmatmul.bf16.gmra.mxu0 %v1940
      %v2021 = vpop.f32.mrf.mxu0
      %v2022 = vadd.f32 0.0, %v2021
      %v2023 = vpop.f32.mrf.mxu0
      %v2024 = vadd.f32 0.0, %v2023
      %2025 = vmatmul.bf16.gmra.mxu0 %v1943
      %v2026 = vpop.f32.mrf.mxu0
      %v2027 = vadd.f32 0.0, %v2026
      %v2028 = vpop.f32.mrf.mxu0
      %v2029 = vadd.f32 0.0, %v2028
      %2030 = vmatmul.bf16.gmra.mxu0 %v1946
      %v2031 = vpop.f32.mrf.mxu0
      %v2032 = vadd.f32 0.0, %v2031
      %v2033 = vpop.f32.mrf.mxu0
      %v2034 = vadd.f32 0.0, %v2033
      %2035 = vmatmul.bf16.gmra.mxu0 %v1949
      %v2036 = vpop.f32.mrf.mxu0
      %v2037 = vadd.f32 0.0, %v2036
      %v2038 = vpop.f32.mrf.mxu0
      %v2039 = vadd.f32 0.0, %v2038
      %2040 = vmatmul.bf16.gmra.mxu0 %v1952
      %v2041 = vpop.f32.mrf.mxu0
      %v2042 = vadd.f32 0.0, %v2041
      %v2043 = vpop.f32.mrf.mxu0
      %v2044 = vadd.f32 0.0, %v2043
      %2045 = vdwg.mxu0
      %v2046 = vadd.f32 %v1824, %v1967
      %v2047 = vadd.f32 %v1825, %v1969
      %v2048 = vadd.f32 %v1826, %v1972
      %v2049 = vadd.f32 %v1827, %v1974
      %v2050 = vadd.f32 %v1828, %v1977
      %v2051 = vadd.f32 %v1829, %v1979
      %v2052 = vadd.f32 %v1830, %v1982
      %v2053 = vadd.f32 %v1831, %v1984
      %v2054 = vadd.f32 %v1832, %v1987
      %v2055 = vadd.f32 %v1833, %v1989
      %v2056 = vadd.f32 %v1834, %v1992
      %v2057 = vadd.f32 %v1835, %v1994
      %v2058 = vadd.f32 %v1836, %v1997
      %v2059 = vadd.f32 %v1837, %v1999
      %v2060 = vadd.f32 %v1838, %v2002
      %v2061 = vadd.f32 %v1839, %v2004
      %v2062 = vadd.f32 %v1840, %v2007
      %v2063 = vadd.f32 %v1841, %v2009
      %v2064 = vadd.f32 %v1842, %v2012
      %v2065 = vadd.f32 %v1843, %v2014
      %v2066 = vadd.f32 %v1844, %v2017
      %v2067 = vadd.f32 %v1845, %v2019
      %v2068 = vadd.f32 %v1846, %v2022
      %v2069 = vadd.f32 %v1847, %v2024
      %v2070 = vadd.f32 %v1848, %v2027
      %v2071 = vadd.f32 %v1849, %v2029
      %v2072 = vadd.f32 %v1850, %v2032
      %v2073 = vadd.f32 %v1851, %v2034
      %v2074 = vadd.f32 %v1852, %v2037
      %v2075 = vadd.f32 %v1853, %v2039
      %v2076 = vadd.f32 %v1854, %v2042
      %v2077 = vadd.f32 %v1855, %v2044
      %v2078 = vld [vmem:[%s1633 + $0x2] sm:$0xff]
      %v2079 = vld [vmem:[%s1633 + $0xa] sm:$0xff]
      %v2080 = vld [vmem:[%s1633 + $0x1a] sm:$0xff]
      %v2081 = vld [vmem:[%s1633 + $0x22] sm:$0xff]
      %v2082 = vld [vmem:[%s1633 + $0x32] sm:$0xff]
      %v2083 = vld [vmem:[%s1633 + $0x3a] sm:$0xff]
      %v2084 = vld [vmem:[%s1633 + $0x4a] sm:$0xff]
      %v2085 = vld [vmem:[%s1633 + $0x52] sm:$0xff]
      %v2086 = vld [vmem:[%s1633 + $0x62] sm:$0xff]
      %v2087 = vld [vmem:[%s1633 + $0x6a] sm:$0xff]
      %v2088 = vld [vmem:[%s1633 + $0x7a] sm:$0xff]
      %v2089 = vld [vmem:[%s1633 + $0x82] sm:$0xff]
      %v2090 = vld [vmem:[%s1633 + $0x92] sm:$0xff]
      %v2091 = vld [vmem:[%s1633 + $0x9a] sm:$0xff]
      %v2092 = vld [vmem:[%s1633 + $0xaa] sm:$0xff]
      %v2093 = vld [vmem:[%s1633 + $0xb2] sm:$0xff]
      %v2094 = vld [vmem:[%s1633 + $0xc2] sm:$0xff]
      %v2095 = vld [vmem:[%s1633 + $0xca] sm:$0xff]
      %v2096 = vld [vmem:[%s1633 + $0xda] sm:$0xff]
      %v2097 = vld [vmem:[%s1633 + $0xe2] sm:$0xff]
      %v2098 = vld [vmem:[%s1633 + $0xf2] sm:$0xff]
      %v2099 = vld [vmem:[%s1633 + $0xfa] sm:$0xff]
      %v2100 = vld [vmem:[%s1633 + $0x10a] sm:$0xff]
      %v2101 = vld [vmem:[%s1633 + $0x112] sm:$0xff]
      %v2102 = vld [vmem:[%s1633 + $0x122] sm:$0xff]
      %v2103 = vld [vmem:[%s1633 + $0x12a] sm:$0xff]
      %v2104 = vld [vmem:[%s1633 + $0x13a] sm:$0xff]
      %v2105 = vld [vmem:[%s1633 + $0x142] sm:$0xff]
      %v2106 = vld [vmem:[%s1633 + $0x152] sm:$0xff]
      %v2107 = vld [vmem:[%s1633 + $0x15a] sm:$0xff]
      %v2108 = vld [vmem:[%s1633 + $0x16a] sm:$0xff]
      %v2109 = vld [vmem:[%s1633 + $0x172] sm:$0xff]
      %v2110 = vpack.c.bf16 %v2079, %v2078
      %v2111 = vpack.c.bf16 %v2081, %v2080
      %v2112 = vpack.c.bf16 %v2083, %v2082
      %v2113 = vpack.c.bf16 %v2085, %v2084
      %v2114 = vpack.c.bf16 %v2087, %v2086
      %v2115 = vpack.c.bf16 %v2089, %v2088
      %v2116 = vpack.c.bf16 %v2091, %v2090
      %v2117 = vpack.c.bf16 %v2093, %v2092
      %v2118 = vpack.c.bf16 %v2095, %v2094
      %v2119 = vpack.c.bf16 %v2097, %v2096
      %v2120 = vpack.c.bf16 %v2099, %v2098
      %v2121 = vpack.c.bf16 %v2101, %v2100
      %v2122 = vpack.c.bf16 %v2103, %v2102
      %v2123 = vpack.c.bf16 %v2105, %v2104
      %v2124 = vpack.c.bf16 %v2107, %v2106
      %v2125 = vpack.c.bf16 %v2109, %v2108
      %s2126 = scalar_lea.vmem %s1, 16
      %v2127 = vld [vmem:[%s2126] sm:$0x3]
      %v2129 = vsel %vm205, %v2110, 0
      %v2132 = vsel %vm205, %v2111, 0
      %v2135 = vsel %vm205, %v2112, 0
      %v2138 = vsel %vm205, %v2113, 0
      %v2141 = vsel %vm205, %v2114, 0
      %v2144 = vsel %vm205, %v2115, 0
      %v2147 = vsel %vm205, %v2116, 0
      %v2150 = vsel %vm205, %v2117, 0
      %v2153 = vsel %vm205, %v2118, 0
      %v2156 = vsel %vm205, %v2119, 0
      %v2159 = vsel %vm205, %v2120, 0
      %v2162 = vsel %vm205, %v2121, 0
      %v2165 = vsel %vm205, %v2122, 0
      %v2168 = vsel %vm205, %v2123, 0
      %v2171 = vsel %vm205, %v2124, 0
      %v2174 = vsel %vm205, %v2125, 0
      %v2177 = vand.u32 %v2127, %v398
      %2179 = vmatpush.bf16.msra.mxu0 0
      %2180 = vmatpush.bf16.msra.mxu0 0
      %2181 = vmatpush.bf16.msra.mxu0 0
      %2182 = vmatpush.bf16.msra.mxu0 0
      %2183 = vmatpush.bf16.msra.mxu0 0
      %2184 = vmatpush.bf16.msra.mxu0 0
      %2185 = vmatpush.bf16.msra.mxu0 0
      %2186 = vmatpush.bf16.msra.mxu0 %v2177
      %2187 = vmatmul.bf16.gmra.mxu0 %v2129
      %v2188 = vpop.f32.mrf.mxu0
      %v2189 = vadd.f32 0.0, %v2188
      %v2190 = vpop.f32.mrf.mxu0
      %v2191 = vadd.f32 0.0, %v2190
      %2192 = vmatmul.bf16.gmra.mxu0 %v2132
      %v2193 = vpop.f32.mrf.mxu0
      %v2194 = vadd.f32 0.0, %v2193
      %v2195 = vpop.f32.mrf.mxu0
      %v2196 = vadd.f32 0.0, %v2195
      %2197 = vmatmul.bf16.gmra.mxu0 %v2135
      %v2198 = vpop.f32.mrf.mxu0
      %v2199 = vadd.f32 0.0, %v2198
      %v2200 = vpop.f32.mrf.mxu0
      %v2201 = vadd.f32 0.0, %v2200
      %2202 = vmatmul.bf16.gmra.mxu0 %v2138
      %v2203 = vpop.f32.mrf.mxu0
      %v2204 = vadd.f32 0.0, %v2203
      %v2205 = vpop.f32.mrf.mxu0
      %v2206 = vadd.f32 0.0, %v2205
      %2207 = vmatmul.bf16.gmra.mxu0 %v2141
      %v2208 = vpop.f32.mrf.mxu0
      %v2209 = vadd.f32 0.0, %v2208
      %v2210 = vpop.f32.mrf.mxu0
      %v2211 = vadd.f32 0.0, %v2210
      %2212 = vmatmul.bf16.gmra.mxu0 %v2144
      %v2213 = vpop.f32.mrf.mxu0
      %v2214 = vadd.f32 0.0, %v2213
      %v2215 = vpop.f32.mrf.mxu0
      %v2216 = vadd.f32 0.0, %v2215
      %2217 = vmatmul.bf16.gmra.mxu0 %v2147
      %v2218 = vpop.f32.mrf.mxu0
      %v2219 = vadd.f32 0.0, %v2218
      %v2220 = vpop.f32.mrf.mxu0
      %v2221 = vadd.f32 0.0, %v2220
      %2222 = vmatmul.bf16.gmra.mxu0 %v2150
      %v2223 = vpop.f32.mrf.mxu0
      %v2224 = vadd.f32 0.0, %v2223
      %v2225 = vpop.f32.mrf.mxu0
      %v2226 = vadd.f32 0.0, %v2225
      %2227 = vmatmul.bf16.gmra.mxu0 %v2153
      %v2228 = vpop.f32.mrf.mxu0
      %v2229 = vadd.f32 0.0, %v2228
      %v2230 = vpop.f32.mrf.mxu0
      %v2231 = vadd.f32 0.0, %v2230
      %2232 = vmatmul.bf16.gmra.mxu0 %v2156
      %v2233 = vpop.f32.mrf.mxu0
      %v2234 = vadd.f32 0.0, %v2233
      %v2235 = vpop.f32.mrf.mxu0
      %v2236 = vadd.f32 0.0, %v2235
      %2237 = vmatmul.bf16.gmra.mxu0 %v2159
      %v2238 = vpop.f32.mrf.mxu0
      %v2239 = vadd.f32 0.0, %v2238
      %v2240 = vpop.f32.mrf.mxu0
      %v2241 = vadd.f32 0.0, %v2240
      %2242 = vmatmul.bf16.gmra.mxu0 %v2162
      %v2243 = vpop.f32.mrf.mxu0
      %v2244 = vadd.f32 0.0, %v2243
      %v2245 = vpop.f32.mrf.mxu0
      %v2246 = vadd.f32 0.0, %v2245
      %2247 = vmatmul.bf16.gmra.mxu0 %v2165
      %v2248 = vpop.f32.mrf.mxu0
      %v2249 = vadd.f32 0.0, %v2248
      %v2250 = vpop.f32.mrf.mxu0
      %v2251 = vadd.f32 0.0, %v2250
      %2252 = vmatmul.bf16.gmra.mxu0 %v2168
      %v2253 = vpop.f32.mrf.mxu0
      %v2254 = vadd.f32 0.0, %v2253
      %v2255 = vpop.f32.mrf.mxu0
      %v2256 = vadd.f32 0.0, %v2255
      %2257 = vmatmul.bf16.gmra.mxu0 %v2171
      %v2258 = vpop.f32.mrf.mxu0
      %v2259 = vadd.f32 0.0, %v2258
      %v2260 = vpop.f32.mrf.mxu0
      %v2261 = vadd.f32 0.0, %v2260
      %2262 = vmatmul.bf16.gmra.mxu0 %v2174
      %v2263 = vpop.f32.mrf.mxu0
      %v2264 = vadd.f32 0.0, %v2263
      %v2265 = vpop.f32.mrf.mxu0
      %v2266 = vadd.f32 0.0, %v2265
      %2267 = vdwg.mxu0
      %v2268 = vadd.f32 %v2046, %v2189
      %v2269 = vadd.f32 %v2047, %v2191
      %v2270 = vadd.f32 %v2048, %v2194
      %v2271 = vadd.f32 %v2049, %v2196
      %v2272 = vadd.f32 %v2050, %v2199
      %v2273 = vadd.f32 %v2051, %v2201
      %v2274 = vadd.f32 %v2052, %v2204
      %v2275 = vadd.f32 %v2053, %v2206
      %v2276 = vadd.f32 %v2054, %v2209
      %v2277 = vadd.f32 %v2055, %v2211
      %v2278 = vadd.f32 %v2056, %v2214
      %v2279 = vadd.f32 %v2057, %v2216
      %v2280 = vadd.f32 %v2058, %v2219
      %v2281 = vadd.f32 %v2059, %v2221
      %v2282 = vadd.f32 %v2060, %v2224
      %v2283 = vadd.f32 %v2061, %v2226
      %v2284 = vadd.f32 %v2062, %v2229
      %v2285 = vadd.f32 %v2063, %v2231
      %v2286 = vadd.f32 %v2064, %v2234
      %v2287 = vadd.f32 %v2065, %v2236
      %v2288 = vadd.f32 %v2066, %v2239
      %v2289 = vadd.f32 %v2067, %v2241
      %v2290 = vadd.f32 %v2068, %v2244
      %v2291 = vadd.f32 %v2069, %v2246
      %v2292 = vadd.f32 %v2070, %v2249
      %v2293 = vadd.f32 %v2071, %v2251
      %v2294 = vadd.f32 %v2072, %v2254
      %v2295 = vadd.f32 %v2073, %v2256
      %v2296 = vadd.f32 %v2074, %v2259
      %v2297 = vadd.f32 %v2075, %v2261
      %v2298 = vadd.f32 %v2076, %v2264
      %v2299 = vadd.f32 %v2077, %v2266
      %vm2300 = vcmask 130048
      %2301 = vst.msk [vmem:[%s170] sm:$0xff] %vm2300, %v2268
      %2302 = vst.msk [vmem:[%s170 + $0x8] sm:$0xff] %vm2300, %v2269
      %2303 = vst.msk [vmem:[%s170 + $0x10] sm:$0xff] %vm2300, %v2270
      %2304 = vst.msk [vmem:[%s170 + $0x18] sm:$0xff] %vm2300, %v2271
      %2305 = vst.msk [vmem:[%s170 + $0x20] sm:$0xff] %vm2300, %v2272
      %2306 = vst.msk [vmem:[%s170 + $0x28] sm:$0xff] %vm2300, %v2273
      %2307 = vst.msk [vmem:[%s170 + $0x30] sm:$0xff] %vm2300, %v2274
      %2308 = vst.msk [vmem:[%s170 + $0x38] sm:$0xff] %vm2300, %v2275
      %2309 = vst.msk [vmem:[%s170 + $0x40] sm:$0xff] %vm2300, %v2276
      %2310 = vst.msk [vmem:[%s170 + $0x48] sm:$0xff] %vm2300, %v2277
      %2311 = vst.msk [vmem:[%s170 + $0x50] sm:$0xff] %vm2300, %v2278
      %2312 = vst.msk [vmem:[%s170 + $0x58] sm:$0xff] %vm2300, %v2279
      %2313 = vst.msk [vmem:[%s170 + $0x60] sm:$0xff] %vm2300, %v2280
      %2314 = vst.msk [vmem:[%s170 + $0x68] sm:$0xff] %vm2300, %v2281
      %2315 = vst.msk [vmem:[%s170 + $0x70] sm:$0xff] %vm2300, %v2282
      %2316 = vst.msk [vmem:[%s170 + $0x78] sm:$0xff] %vm2300, %v2283
      %2317 = vst.msk [vmem:[%s170 + $0x80] sm:$0xff] %vm2300, %v2284
      %2318 = vst.msk [vmem:[%s170 + $0x88] sm:$0xff] %vm2300, %v2285
      %2319 = vst.msk [vmem:[%s170 + $0x90] sm:$0xff] %vm2300, %v2286
      %2320 = vst.msk [vmem:[%s170 + $0x98] sm:$0xff] %vm2300, %v2287
      %2321 = vst.msk [vmem:[%s170 + $0xa0] sm:$0xff] %vm2300, %v2288
      %2322 = vst.msk [vmem:[%s170 + $0xa8] sm:$0xff] %vm2300, %v2289
      %2323 = vst.msk [vmem:[%s170 + $0xb0] sm:$0xff] %vm2300, %v2290
      %2324 = vst.msk [vmem:[%s170 + $0xb8] sm:$0xff] %vm2300, %v2291
      %2325 = vst.msk [vmem:[%s170 + $0xc0] sm:$0xff] %vm2300, %v2292
      %2326 = vst.msk [vmem:[%s170 + $0xc8] sm:$0xff] %vm2300, %v2293
      %2327 = vst.msk [vmem:[%s170 + $0xd0] sm:$0xff] %vm2300, %v2294
      %2328 = vst.msk [vmem:[%s170 + $0xd8] sm:$0xff] %vm2300, %v2295
      %2329 = vst.msk [vmem:[%s170 + $0xe0] sm:$0xff] %vm2300, %v2296
      %2330 = vst.msk [vmem:[%s170 + $0xe8] sm:$0xff] %vm2300, %v2297
      %2331 = vst.msk [vmem:[%s170 + $0xf0] sm:$0xff] %vm2300, %v2298
      %2332 = vst.msk [vmem:[%s170 + $0xf8] sm:$0xff] %vm2300, %v2299
      %p2333 = scmp.lt.s32.totalorder %s14, 1
      %s2334 = scalar_select %p2333, %s14, 1
      %s2335 = smul.addr %s2334, 32
      %s2336 = smul.addr %s2335, 8
      %s2337 = scalar_lea.vmem %s3, %s2336
      // Predicated region
      $region33: #{tpu_custom_call.1} parent=31 // pred_check
        %p2338 = pneg %p100
      $region34: #{tpu_custom_call.1} parent=31 // pred_check_branch
        %2340 = sbr.rel (%p2338) target = $region36
      $region35: #{tpu_custom_call.1} parent=31 // pred_region
        _
      $region36: #{tpu_custom_call.1} parent=31 // pred_fallthru
        _
    $region32: #{tpu_custom_call.1} parent=5 // pred_fallthru
      _
    %p2341 = scmp.le.s32.totalorder 2, %s9
    // Predicated region
    $region37: #{tpu_custom_call.1} parent=5 // pred_check
      %p2342 = pneg %p2341
    $region38: #{tpu_custom_call.1} parent=5 // pred_check_branch
      %2344 = sbr.rel (%p2342) target = $region40
    $region39: #{tpu_custom_call.1} parent=5 // pred_region
      %s2345 = ssub.s32 %s9, 2
      // Predicated region
      $region41: #{tpu_custom_call.1} parent=39 // pred_check
        %p2346 = pneg %p106
      $region42: #{tpu_custom_call.1} parent=39 // pred_check_branch
        %2348 = sbr.rel (%p2346) target = $region44
      $region43: #{tpu_custom_call.1} parent=39 // pred_region
        %p2349 = scmp.lt.s32.totalorder %s15, 1
        %s2350 = scalar_select %p2349, %s15, 1
        %s2351 = smul.addr %s2350, 32
        %s2352 = smul.addr %s2351, 8
        %s2353 = scalar_lea.vmem %s3, %s2352
      $region44: #{tpu_custom_call.1} parent=39 // pred_fallthru
        _
    $region40: #{tpu_custom_call.1} parent=5 // pred_fallthru
      _
  $region6: #{tpu_custom_call.1} parent=0 // loop_footer
    %s13 = sadd.s32 1, %s9
  $region7: #{tpu_custom_call.1} parent=0 // loop_footer_branch
    %8 = sbr.rel target = $region3
  $region8: #{tpu_custom_call.1} parent=0 // loop_exit
    _

</llo_original>
